<compile_context>
chip_gen: v7x
topology: tpu7x:2x2x1
jax: 0.10.0
libtpu: 0.0.40
codegen_flags: <defaults>
</compile_context>

<pallas_src>
import functools

import jax
import jax.numpy as jnp
from jax import lax
from jax.experimental import pallas as pl
from jax.experimental.pallas import tpu as pltpu


def _round_up(x, m):
    return (x + m - 1) // m * m


def _graph_gru_kernel(msgs_ref, lf_ref, sel_ref,
                      w_lf_ref, b_lf_ref,
                      wz_m_ref, ur_ref, wh_m_ref,
                      out_ref, *, depth, num_nei):
    Mp, Hp = out_ref.shape
    K = num_nei

    # ---------- loop-invariant precompute (hoisted out of the recurrence) ----
    lf = lf_ref[...]                                              # (Mp, I)
    # Fused projection: lf @ [W_z_lf | W_r | W_h_lf] + [b_z | b_r | b_h]
    lf_proj = (jnp.dot(lf, w_lf_ref[...], preferred_element_type=jnp.float32)
               + b_lf_ref[...])                                   # (Mp, 3*Hp)
    z_lf = lf_proj[:, 0 * Hp:1 * Hp]                              # W_z(lf) + b_z
    r_lf = lf_proj[:, 1 * Hp:2 * Hp]                              # W_r(lf) + b_r
    h_lf = lf_proj[:, 2 * Hp:3 * Hp]                              # W_h(lf) + b_h
    # Replicated r_lf for the batched (K*Mp, Hp) r-gate slab (built once).
    r_lf_slab = jnp.concatenate([r_lf] * K, axis=0)               # (K*Mp, Hp)

    wz_m = wz_m_ref[...]                                          # (Hp, Hp)
    ur = ur_ref[...]                                              # (Hp, Hp)
    wh_m = wh_m_ref[...]                                          # (Hp, Hp)
    sel = sel_ref[...]                                            # ((K+1)*Mp, Mp)

    # mask: row 0 is the "null" message and is zeroed every iteration
    row_idx = lax.broadcasted_iota(jnp.int32, (Mp, Hp), 0)
    mask = (row_idx != 0).astype(jnp.float32)

    def body(msgs):
        # One MXU launch does both the neighbor-sum and the K row gathers:
        #   rows [0, Mp)              -> sum_k messages[mess_graph[:, k]]
        #   rows [(k+1)*Mp, (k+2)*Mp) -> messages[mess_graph[:, k]]
        slab = jnp.dot(sel, msgs, preferred_element_type=jnp.float32)
        sum_msg = slab[:Mp, :]                                    # (Mp, Hp)
        nei_slab = slab[Mp:, :]                                   # (K*Mp, Hp)

        # z = sigmoid(W_z([local_field, sum_msg]))
        z = jax.nn.sigmoid(
            z_lf + jnp.dot(sum_msg, wz_m, preferred_element_type=jnp.float32))

        # r_k = sigmoid(W_r(lf) + U_r(msg_nei_k)) — single batched matmul+sigmoid
        r_slab = jax.nn.sigmoid(
            r_lf_slab
            + jnp.dot(nei_slab, ur, preferred_element_type=jnp.float32))
        gated = r_slab * nei_slab                                 # (K*Mp, Hp)
        sum_gated = gated[0:Mp, :]
        for k in range(1, K):
            sum_gated = sum_gated + gated[k * Mp:(k + 1) * Mp, :]

        # pre_msg = tanh(W_h([local_field, sum_gated]))
        pre_msg = jnp.tanh(
            h_lf + jnp.dot(sum_gated, wh_m, preferred_element_type=jnp.float32))

        new_msgs = (1.0 - z) * sum_msg + z * pre_msg
        return new_msgs * mask

    out_ref[...] = lax.fori_loop(0, depth, lambda _, m: body(m),
                                 msgs_ref[...], unroll=True)


@functools.partial(jax.jit, static_argnames=("depth",))
def graph_gru_forward(messages, local_field, mess_graph, params, depth):
    """Pallas implementation of GraphGRU.forward."""
    M, H = messages.shape
    K = mess_graph.shape[1]
    f32 = jnp.float32

    # Lane-dense hidden dim, sublane-aligned message count.
    Hp = _round_up(H, 128)
    Mp = _round_up(M, 8)
    pad_h = Hp - H
    pad_m = Mp - M

    msgs_p = jnp.pad(messages.astype(f32), ((0, pad_m), (0, pad_h)))
    lf_p = jnp.pad(local_field.astype(f32), ((0, pad_m), (0, 0)))
    graph_p = jnp.pad(mess_graph, ((0, pad_m), (0, 0)))  # padded rows -> index 0

    def pad_iw(w):   # (I, H) -> (I, Hp)
        return jnp.pad(w.astype(f32), ((0, 0), (0, pad_h)))

    def pad_hh(w):   # (H, H) -> (Hp, Hp)
        return jnp.pad(w.astype(f32), ((0, pad_h), (0, pad_h)))

    def pad_b(b):    # (1, H) -> (1, Hp)
        return jnp.pad(b.astype(f32), ((0, 0), (0, pad_h)))

    # Fused loop-invariant local-field weights / biases: (I, 3*Hp), (1, 3*Hp)
    w_lf = jnp.concatenate(
        [pad_iw(params["wz_lf"]), pad_iw(params["wr"]), pad_iw(params["wh_lf"])],
        axis=1)
    b_lf = jnp.concatenate(
        [pad_b(params["bz"]), pad_b(params["br"]), pad_b(params["bh"])], axis=1)

    wz_m = pad_hh(params["wz_m"])
    ur = pad_hh(params["ur"])
    wh_m = pad_hh(params["wh_m"])

    # One-hot selection matrices for the gather, collapsed into a single
    # ((K+1)*Mp, Mp) operand: first Mp rows sum over neighbors, the remaining
    # K*Mp rows gather neighbor k for every message row.
    oh = jax.nn.one_hot(graph_p, Mp, dtype=f32)                   # (Mp, K, Mp)
    sel_sum = oh.sum(axis=1)                                      # (Mp, Mp)
    sel_k = jnp.transpose(oh, (1, 0, 2)).reshape(K * Mp, Mp)      # (K*Mp, Mp)
    sel = jnp.concatenate([sel_sum, sel_k], axis=0)               # ((K+1)*Mp, Mp)

    vmem = pl.BlockSpec(memory_space=pltpu.MemorySpace.VMEM)
    kernel = functools.partial(_graph_gru_kernel, depth=depth, num_nei=K)

    out_p = pl.pallas_call(
        kernel,
        out_shape=jax.ShapeDtypeStruct((Mp, Hp), f32),
        in_specs=[vmem] * 8,
        out_specs=vmem,
        input_output_aliases={0: 0},          # messages updated in place
        compiler_params=pltpu.CompilerParams(
            vmem_limit_bytes=64 * 1024 * 1024),
    )(msgs_p, lf_p, sel, w_lf, b_lf, wz_m, ur, wh_m)

    return out_p[:M, :H]


def graph_gru_reference(messages, local_field, mess_graph, params, depth):
    """Pure-JAX reference mirroring the PyTorch forward pass exactly."""
    M, H = messages.shape
    mask = jnp.ones((M, 1), jnp.float32).at[0].set(0.0)
    wz = jnp.concatenate([params["wz_lf"], params["wz_m"]], axis=0)
    wh = jnp.concatenate([params["wh_lf"], params["wh_m"]], axis=0)
    for _ in range(depth):
        msg_nei = messages[mess_graph]                      # (M, K, H)
        sum_msg = msg_nei.sum(axis=1)
        z_input = jnp.concatenate([local_field, sum_msg], axis=1)
        z = jax.nn.sigmoid(z_input @ wz + params["bz"])
        r_1 = (local_field @ params["wr"])[:, None, :]
        r_2 = msg_nei @ params["ur"] + params["br"]
        r = jax.nn.sigmoid(r_1 + r_2)
        sum_gated = (r * msg_nei).sum(axis=1)
        msg_input = jnp.concatenate([local_field, sum_gated], axis=1)
        pre_msg = jnp.tanh(msg_input @ wh + params["bh"])
        messages = (1.0 - z) * sum_msg + z * pre_msg
        messages = messages * mask
    return messages


def init_params(key, input_size, hidden_size):
    """Deterministic parameter init (PyTorch Linear layers, stored as (in, out))."""
    ks = jax.random.split(key, 8)
    s = 0.1
    return {
        # W_z : Linear(input+hidden -> hidden), split into the two input blocks
        "wz_lf": s * jax.random.normal(ks[0], (input_size, hidden_size), jnp.float32),
        "wz_m":  s * jax.random.normal(ks[1], (hidden_size, hidden_size), jnp.float32),
        "bz":    s * jax.random.normal(ks[2], (1, hidden_size), jnp.float32),
        # W_r : Linear(input -> hidden, bias=False)
        "wr":    s * jax.random.normal(ks[3], (input_size, hidden_size), jnp.float32),
        # U_r : Linear(hidden -> hidden)
        "ur":    s * jax.random.normal(ks[4], (hidden_size, hidden_size), jnp.float32),
        "br":    s * jax.random.normal(ks[5], (1, hidden_size), jnp.float32),
        # W_h : Linear(input+hidden -> hidden), split into the two input blocks
        "wh_lf": s * jax.random.normal(ks[6], (input_size, hidden_size), jnp.float32),
        "wh_m":  s * jax.random.normal(ks[7], (hidden_size, hidden_size), jnp.float32),
        "bh":    jnp.zeros((1, hidden_size), jnp.float32),
    }


if __name__ == "__main__":
    # Small synthetic sizes consistent with the module's forward pass.
    M = 16          # number of messages (rows); row 0 is the null message
    K = 4           # max neighbors per message
    INPUT_SIZE = 8
    HIDDEN_SIZE = 32
    DEPTH = 3

    key = jax.random.PRNGKey(0)
    k_msg, k_lf, k_graph, k_par = jax.random.split(key, 4)

    messages = jax.random.normal(k_msg, (M, HIDDEN_SIZE), jnp.float32)
    local_field = jax.random.normal(k_lf, (M, INPUT_SIZE), jnp.float32)
    mess_graph = jax.random.randint(k_graph, (M, K), 0, M, dtype=jnp.int32)
    params = init_params(k_par, INPUT_SIZE, HIDDEN_SIZE)

    out = graph_gru_forward(messages, local_field, mess_graph, params, DEPTH)
    out = jax.block_until_ready(out)

    ref = graph_gru_reference(messages, local_field, mess_graph, params, DEPTH)
    assert out.shape == (M, HIDDEN_SIZE)
    # f32 throughout; tolerance covers accumulation-order differences only.
    assert jnp.allclose(out, ref, atol=1e-4, rtol=1e-4), "Pallas vs reference mismatch"

    print("KERNEL_OK")
</pallas_src>

<mosaic_0001>
module attributes {stable_mosaic.version = 11 : i64} {
  func.func @_graph_gru_kernel(%arg0: memref<16x128xf32, #tpu.memory_space<vmem>>, %arg1: memref<16x8xf32, #tpu.memory_space<vmem>>, %arg2: memref<80x16xf32, #tpu.memory_space<vmem>>, %arg3: memref<8x384xf32, #tpu.memory_space<vmem>>, %arg4: memref<1x384xf32, #tpu.memory_space<vmem>>, %arg5: memref<128x128xf32, #tpu.memory_space<vmem>>, %arg6: memref<128x128xf32, #tpu.memory_space<vmem>>, %arg7: memref<128x128xf32, #tpu.memory_space<vmem>>, %arg8: memref<16x128xf32, #tpu.memory_space<vmem>>) attributes {dimension_semantics = [], scalar_prefetch = 0 : i64, scratch_operands = 0 : i64, tpu.core_type = #tpu.core_type<tc>} {
    %c0 = arith.constant 0 : index
    %c0_0 = arith.constant 0 : index
    %0 = vector.load %arg1[%c0, %c0_0] : memref<16x8xf32, #tpu.memory_space<vmem>>, vector<16x8xf32>
    %c0_1 = arith.constant 0 : index
    %c0_2 = arith.constant 0 : index
    %1 = vector.load %arg3[%c0_1, %c0_2] : memref<8x384xf32, #tpu.memory_space<vmem>>, vector<8x384xf32>
    %cst = arith.constant dense<0.000000e+00> : vector<16x384xf32>
    %2 = tpu.matmul %0, %1, %cst {dimension_numbers = #tpu.dot_dimension_numbers<[1], [0], [0], [1], [0, 0, 1, 1], [], []>} : vector<16x8xf32>, vector<8x384xf32>, vector<16x384xf32> -> vector<16x384xf32>
    %c0_3 = arith.constant 0 : index
    %c0_4 = arith.constant 0 : index
    %3 = vector.load %arg4[%c0_3, %c0_4] : memref<1x384xf32, #tpu.memory_space<vmem>>, vector<1x384xf32>
    %4 = vector.broadcast %3 : vector<1x384xf32> to vector<16x384xf32>
    %5 = arith.addf %2, %4 : vector<16x384xf32>
    %6 = vector.extract_strided_slice %5 {offsets = [0, 0], sizes = [16, 128], strides = [1, 1]} : vector<16x384xf32> to vector<16x128xf32>
    %7 = vector.extract_strided_slice %5 {offsets = [0, 128], sizes = [16, 128], strides = [1, 1]} : vector<16x384xf32> to vector<16x128xf32>
    %8 = vector.extract_strided_slice %5 {offsets = [0, 256], sizes = [16, 128], strides = [1, 1]} : vector<16x384xf32> to vector<16x128xf32>
    %9 = tpu.concatenate %7, %7, %7, %7 in 0 : vector<16x128xf32>, vector<16x128xf32>, vector<16x128xf32>, vector<16x128xf32> -> vector<64x128xf32>
    %c0_5 = arith.constant 0 : index
    %c0_6 = arith.constant 0 : index
    %10 = vector.load %arg5[%c0_5, %c0_6] : memref<128x128xf32, #tpu.memory_space<vmem>>, vector<128x128xf32>
    %c0_7 = arith.constant 0 : index
    %c0_8 = arith.constant 0 : index
    %11 = vector.load %arg6[%c0_7, %c0_8] : memref<128x128xf32, #tpu.memory_space<vmem>>, vector<128x128xf32>
    %c0_9 = arith.constant 0 : index
    %c0_10 = arith.constant 0 : index
    %12 = vector.load %arg7[%c0_9, %c0_10] : memref<128x128xf32, #tpu.memory_space<vmem>>, vector<128x128xf32>
    %c0_11 = arith.constant 0 : index
    %c0_12 = arith.constant 0 : index
    %13 = vector.load %arg2[%c0_11, %c0_12] : memref<80x16xf32, #tpu.memory_space<vmem>>, vector<80x16xf32>
    %14 = tpu.iota {dimensions = array<i32: 0>} : vector<16x128xi32>
    %c0_i32 = arith.constant 0 : i32
    %15 = vector.broadcast %c0_i32 : i32 to vector<16x128xi32>
    %16 = arith.cmpi ne, %14, %15 : vector<16x128xi32>
    %17 = arith.extui %16 : vector<16x128xi1> to vector<16x128xi32>
    %18 = arith.sitofp %17 : vector<16x128xi32> to vector<16x128xf32>
    %c0_13 = arith.constant 0 : index
    %c0_14 = arith.constant 0 : index
    %19 = vector.load %arg0[%c0_13, %c0_14] : memref<16x128xf32, #tpu.memory_space<vmem>>, vector<16x128xf32>
    %c0_i32_15 = arith.constant 0 : i32
    %cst_16 = arith.constant dense<0.000000e+00> : vector<80x128xf32>
    %20 = tpu.matmul %13, %19, %cst_16 {dimension_numbers = #tpu.dot_dimension_numbers<[1], [0], [0], [1], [0, 0, 1, 1], [], []>} : vector<80x16xf32>, vector<16x128xf32>, vector<80x128xf32> -> vector<80x128xf32>
    %21 = vector.extract_strided_slice %20 {offsets = [0, 0], sizes = [16, 128], strides = [1, 1]} : vector<80x128xf32> to vector<16x128xf32>
    %22 = vector.extract_strided_slice %20 {offsets = [16, 0], sizes = [64, 128], strides = [1, 1]} : vector<80x128xf32> to vector<64x128xf32>
    %cst_17 = arith.constant dense<0.000000e+00> : vector<16x128xf32>
    %23 = tpu.matmul %21, %10, %cst_17 {dimension_numbers = #tpu.dot_dimension_numbers<[1], [0], [0], [1], [0, 0, 1, 1], [], []>} : vector<16x128xf32>, vector<128x128xf32>, vector<16x128xf32> -> vector<16x128xf32>
    %24 = arith.addf %6, %23 : vector<16x128xf32>
    %25 = arith.negf %24 : vector<16x128xf32>
    %26 = math.exp %25 : vector<16x128xf32>
    %cst_18 = arith.constant 1.000000e+00 : f32
    %27 = vector.broadcast %cst_18 : f32 to vector<16x128xf32>
    %28 = arith.addf %27, %26 : vector<16x128xf32>
    %29 = arith.divf %27, %28 : vector<16x128xf32>
    %cst_19 = arith.constant dense<0.000000e+00> : vector<64x128xf32>
    %30 = tpu.matmul %22, %11, %cst_19 {dimension_numbers = #tpu.dot_dimension_numbers<[1], [0], [0], [1], [0, 0, 1, 1], [], []>} : vector<64x128xf32>, vector<128x128xf32>, vector<64x128xf32> -> vector<64x128xf32>
    %31 = arith.addf %9, %30 : vector<64x128xf32>
    %32 = arith.negf %31 : vector<64x128xf32>
    %33 = math.exp %32 : vector<64x128xf32>
    %cst_20 = arith.constant 1.000000e+00 : f32
    %34 = vector.broadcast %cst_20 : f32 to vector<64x128xf32>
    %35 = arith.addf %34, %33 : vector<64x128xf32>
    %36 = arith.divf %34, %35 : vector<64x128xf32>
    %37 = arith.mulf %36, %22 : vector<64x128xf32>
    %38 = vector.extract_strided_slice %37 {offsets = [0, 0], sizes = [16, 128], strides = [1, 1]} : vector<64x128xf32> to vector<16x128xf32>
    %39 = vector.extract_strided_slice %37 {offsets = [16, 0], sizes = [16, 128], strides = [1, 1]} : vector<64x128xf32> to vector<16x128xf32>
    %40 = arith.addf %38, %39 : vector<16x128xf32>
    %41 = vector.extract_strided_slice %37 {offsets = [32, 0], sizes = [16, 128], strides = [1, 1]} : vector<64x128xf32> to vector<16x128xf32>
    %42 = arith.addf %40, %41 : vector<16x128xf32>
    %43 = vector.extract_strided_slice %37 {offsets = [48, 0], sizes = [16, 128], strides = [1, 1]} : vector<64x128xf32> to vector<16x128xf32>
    %44 = arith.addf %42, %43 : vector<16x128xf32>
    %cst_21 = arith.constant dense<0.000000e+00> : vector<16x128xf32>
    %45 = tpu.matmul %44, %12, %cst_21 {dimension_numbers = #tpu.dot_dimension_numbers<[1], [0], [0], [1], [0, 0, 1, 1], [], []>} : vector<16x128xf32>, vector<128x128xf32>, vector<16x128xf32> -> vector<16x128xf32>
    %46 = arith.addf %8, %45 : vector<16x128xf32>
    %47 = math.tanh %46 : vector<16x128xf32>
    %cst_22 = arith.constant 1.000000e+00 : f32
    %48 = vector.broadcast %cst_22 : f32 to vector<16x128xf32>
    %49 = arith.subf %48, %29 : vector<16x128xf32>
    %50 = arith.mulf %49, %21 : vector<16x128xf32>
    %51 = arith.mulf %29, %47 : vector<16x128xf32>
    %52 = arith.addf %50, %51 : vector<16x128xf32>
    %53 = arith.mulf %52, %18 : vector<16x128xf32>
    %c1_i32 = arith.constant 1 : i32
    %cst_23 = arith.constant dense<0.000000e+00> : vector<80x128xf32>
    %54 = tpu.matmul %13, %53, %cst_23 {dimension_numbers = #tpu.dot_dimension_numbers<[1], [0], [0], [1], [0, 0, 1, 1], [], []>} : vector<80x16xf32>, vector<16x128xf32>, vector<80x128xf32> -> vector<80x128xf32>
    %55 = vector.extract_strided_slice %54 {offsets = [0, 0], sizes = [16, 128], strides = [1, 1]} : vector<80x128xf32> to vector<16x128xf32>
    %56 = vector.extract_strided_slice %54 {offsets = [16, 0], sizes = [64, 128], strides = [1, 1]} : vector<80x128xf32> to vector<64x128xf32>
    %cst_24 = arith.constant dense<0.000000e+00> : vector<16x128xf32>
    %57 = tpu.matmul %55, %10, %cst_24 {dimension_numbers = #tpu.dot_dimension_numbers<[1], [0], [0], [1], [0, 0, 1, 1], [], []>} : vector<16x128xf32>, vector<128x128xf32>, vector<16x128xf32> -> vector<16x128xf32>
    %58 = arith.addf %6, %57 : vector<16x128xf32>
    %59 = arith.negf %58 : vector<16x128xf32>
    %60 = math.exp %59 : vector<16x128xf32>
    %cst_25 = arith.constant 1.000000e+00 : f32
    %61 = vector.broadcast %cst_25 : f32 to vector<16x128xf32>
    %62 = arith.addf %61, %60 : vector<16x128xf32>
    %63 = arith.divf %61, %62 : vector<16x128xf32>
    %cst_26 = arith.constant dense<0.000000e+00> : vector<64x128xf32>
    %64 = tpu.matmul %56, %11, %cst_26 {dimension_numbers = #tpu.dot_dimension_numbers<[1], [0], [0], [1], [0, 0, 1, 1], [], []>} : vector<64x128xf32>, vector<128x128xf32>, vector<64x128xf32> -> vector<64x128xf32>
    %65 = arith.addf %9, %64 : vector<64x128xf32>
    %66 = arith.negf %65 : vector<64x128xf32>
    %67 = math.exp %66 : vector<64x128xf32>
    %cst_27 = arith.constant 1.000000e+00 : f32
    %68 = vector.broadcast %cst_27 : f32 to vector<64x128xf32>
    %69 = arith.addf %68, %67 : vector<64x128xf32>
    %70 = arith.divf %68, %69 : vector<64x128xf32>
    %71 = arith.mulf %70, %56 : vector<64x128xf32>
    %72 = vector.extract_strided_slice %71 {offsets = [0, 0], sizes = [16, 128], strides = [1, 1]} : vector<64x128xf32> to vector<16x128xf32>
    %73 = vector.extract_strided_slice %71 {offsets = [16, 0], sizes = [16, 128], strides = [1, 1]} : vector<64x128xf32> to vector<16x128xf32>
    %74 = arith.addf %72, %73 : vector<16x128xf32>
    %75 = vector.extract_strided_slice %71 {offsets = [32, 0], sizes = [16, 128], strides = [1, 1]} : vector<64x128xf32> to vector<16x128xf32>
    %76 = arith.addf %74, %75 : vector<16x128xf32>
    %77 = vector.extract_strided_slice %71 {offsets = [48, 0], sizes = [16, 128], strides = [1, 1]} : vector<64x128xf32> to vector<16x128xf32>
    %78 = arith.addf %76, %77 : vector<16x128xf32>
    %cst_28 = arith.constant dense<0.000000e+00> : vector<16x128xf32>
    %79 = tpu.matmul %78, %12, %cst_28 {dimension_numbers = #tpu.dot_dimension_numbers<[1], [0], [0], [1], [0, 0, 1, 1], [], []>} : vector<16x128xf32>, vector<128x128xf32>, vector<16x128xf32> -> vector<16x128xf32>
    %80 = arith.addf %8, %79 : vector<16x128xf32>
    %81 = math.tanh %80 : vector<16x128xf32>
    %cst_29 = arith.constant 1.000000e+00 : f32
    %82 = vector.broadcast %cst_29 : f32 to vector<16x128xf32>
    %83 = arith.subf %82, %63 : vector<16x128xf32>
    %84 = arith.mulf %83, %55 : vector<16x128xf32>
    %85 = arith.mulf %63, %81 : vector<16x128xf32>
    %86 = arith.addf %84, %85 : vector<16x128xf32>
    %87 = arith.mulf %86, %18 : vector<16x128xf32>
    %c2_i32 = arith.constant 2 : i32
    %cst_30 = arith.constant dense<0.000000e+00> : vector<80x128xf32>
    %88 = tpu.matmul %13, %87, %cst_30 {dimension_numbers = #tpu.dot_dimension_numbers<[1], [0], [0], [1], [0, 0, 1, 1], [], []>} : vector<80x16xf32>, vector<16x128xf32>, vector<80x128xf32> -> vector<80x128xf32>
    %89 = vector.extract_strided_slice %88 {offsets = [0, 0], sizes = [16, 128], strides = [1, 1]} : vector<80x128xf32> to vector<16x128xf32>
    %90 = vector.extract_strided_slice %88 {offsets = [16, 0], sizes = [64, 128], strides = [1, 1]} : vector<80x128xf32> to vector<64x128xf32>
    %cst_31 = arith.constant dense<0.000000e+00> : vector<16x128xf32>
    %91 = tpu.matmul %89, %10, %cst_31 {dimension_numbers = #tpu.dot_dimension_numbers<[1], [0], [0], [1], [0, 0, 1, 1], [], []>} : vector<16x128xf32>, vector<128x128xf32>, vector<16x128xf32> -> vector<16x128xf32>
    %92 = arith.addf %6, %91 : vector<16x128xf32>
    %93 = arith.negf %92 : vector<16x128xf32>
    %94 = math.exp %93 : vector<16x128xf32>
    %cst_32 = arith.constant 1.000000e+00 : f32
    %95 = vector.broadcast %cst_32 : f32 to vector<16x128xf32>
    %96 = arith.addf %95, %94 : vector<16x128xf32>
    %97 = arith.divf %95, %96 : vector<16x128xf32>
    %cst_33 = arith.constant dense<0.000000e+00> : vector<64x128xf32>
    %98 = tpu.matmul %90, %11, %cst_33 {dimension_numbers = #tpu.dot_dimension_numbers<[1], [0], [0], [1], [0, 0, 1, 1], [], []>} : vector<64x128xf32>, vector<128x128xf32>, vector<64x128xf32> -> vector<64x128xf32>
    %99 = arith.addf %9, %98 : vector<64x128xf32>
    %100 = arith.negf %99 : vector<64x128xf32>
    %101 = math.exp %100 : vector<64x128xf32>
    %cst_34 = arith.constant 1.000000e+00 : f32
    %102 = vector.broadcast %cst_34 : f32 to vector<64x128xf32>
    %103 = arith.addf %102, %101 : vector<64x128xf32>
    %104 = arith.divf %102, %103 : vector<64x128xf32>
    %105 = arith.mulf %104, %90 : vector<64x128xf32>
    %106 = vector.extract_strided_slice %105 {offsets = [0, 0], sizes = [16, 128], strides = [1, 1]} : vector<64x128xf32> to vector<16x128xf32>
    %107 = vector.extract_strided_slice %105 {offsets = [16, 0], sizes = [16, 128], strides = [1, 1]} : vector<64x128xf32> to vector<16x128xf32>
    %108 = arith.addf %106, %107 : vector<16x128xf32>
    %109 = vector.extract_strided_slice %105 {offsets = [32, 0], sizes = [16, 128], strides = [1, 1]} : vector<64x128xf32> to vector<16x128xf32>
    %110 = arith.addf %108, %109 : vector<16x128xf32>
    %111 = vector.extract_strided_slice %105 {offsets = [48, 0], sizes = [16, 128], strides = [1, 1]} : vector<64x128xf32> to vector<16x128xf32>
    %112 = arith.addf %110, %111 : vector<16x128xf32>
    %cst_35 = arith.constant dense<0.000000e+00> : vector<16x128xf32>
    %113 = tpu.matmul %112, %12, %cst_35 {dimension_numbers = #tpu.dot_dimension_numbers<[1], [0], [0], [1], [0, 0, 1, 1], [], []>} : vector<16x128xf32>, vector<128x128xf32>, vector<16x128xf32> -> vector<16x128xf32>
    %114 = arith.addf %8, %113 : vector<16x128xf32>
    %115 = math.tanh %114 : vector<16x128xf32>
    %cst_36 = arith.constant 1.000000e+00 : f32
    %116 = vector.broadcast %cst_36 : f32 to vector<16x128xf32>
    %117 = arith.subf %116, %97 : vector<16x128xf32>
    %118 = arith.mulf %117, %89 : vector<16x128xf32>
    %119 = arith.mulf %97, %115 : vector<16x128xf32>
    %120 = arith.addf %118, %119 : vector<16x128xf32>
    %121 = arith.mulf %120, %18 : vector<16x128xf32>
    %c0_37 = arith.constant 0 : index
    %c0_38 = arith.constant 0 : index
    %122 = vector.load %arg8[%c0_37, %c0_38] : memref<16x128xf32, #tpu.memory_space<vmem>>, vector<16x128xf32>
    tpu.vector_store %arg8[%c0_37, %c0_38], %121 {strides = array<i32>} : memref<16x128xf32, #tpu.memory_space<vmem>>, vector<16x128xf32>,
    return
  }
}

</mosaic_0001>

<llo_original>
// kernel: graph_gru_forward.1
$region0: #{graph_gru_forward.1}
  #allocation0 [shape = 'u32[]', space=smem, size = 0x4, offset = 0x4, fixed_abs, tag = 'smem constant byte address 0x4 - core index']
  #allocation1 [shape = 'u32[144,128]{1,0:T(1,128)}', space=vmem, size = 0x12000, scoped, tag = 'internal scratch']
  %s0 = inlined_call_operand.hbm [shape: f32[16,128], index: 0, kind: input, shape index: {}, may-alias: {0,8}]
  %s1 = inlined_call_operand.hbm [shape: f32[16,8], index: 1, kind: input, shape index: {}]
  %s2 = inlined_call_operand.hbm [shape: f32[80,16], index: 2, kind: input, shape index: {}]
  %s3 = inlined_call_operand.hbm [shape: f32[8,384], index: 3, kind: input, shape index: {}]
  %s4 = inlined_call_operand.hbm [shape: f32[1,384], index: 4, kind: input, shape index: {}]
  %s5 = inlined_call_operand.hbm [shape: f32[128,128], index: 5, kind: input, shape index: {}]
  %s6 = inlined_call_operand.hbm [shape: f32[128,128], index: 6, kind: input, shape index: {}]
  %s7 = inlined_call_operand.hbm [shape: f32[128,128], index: 7, kind: input, shape index: {}]
  %s8 = inlined_call_operand.hbm [shape: f32[16,128], index: 8, kind: output, shape index: {}, may-alias: {0,8}]
  %s9 = sld [smem:[#allocation0]]
  $region74: #{graph_gru_forward.1} parent=0
    _
  %s11 = ssub.s32 1, %s9
  %s12 = scalar_select 0, %s11, %s9
  $region1: #{graph_gru_forward.1} parent=0
    #allocation2 [shape = 'u8[8192]{0}', space=vmem, size = 0x2000, scoped, tag = 'input window, operand 0, single buffered']
    #allocation3 [shape = 's32[1]{0}', space=sflag, size = 0x4, scoped, tag = 'scoped memory for graph_gru_forward.1']
    #allocation4 [shape = 's32[1]{0}', space=sflag, size = 0x4, scoped, tag = 'scoped memory for graph_gru_forward.1']
    #allocation5 [shape = 'u8[8192]{0}', space=vmem, size = 0x2000, scoped, tag = 'input window, operand 1, single buffered']
    #allocation6 [shape = 's32[1]{0}', space=sflag, size = 0x4, scoped, tag = 'scoped memory for graph_gru_forward.1']
    #allocation7 [shape = 'u8[40960]{0}', space=vmem, size = 0xa000, scoped, tag = 'input window, operand 2, single buffered']
    #allocation8 [shape = 'u8[12288]{0}', space=vmem, size = 0x3000, scoped, tag = 'input window, operand 3, single buffered']
    #allocation9 [shape = 's32[1]{0}', space=sflag, size = 0x4, scoped, tag = 'scoped memory for graph_gru_forward.1']
    #allocation10 [shape = 'u8[1536]{0}', space=vmem, size = 0x800, scoped, tag = 'input window, operand 4, single buffered']
    #allocation11 [shape = 'u8[65536]{0}', space=vmem, size = 0x10000, scoped, tag = 'input window, operand 5, single buffered']
    #allocation12 [shape = 's32[1]{0}', space=sflag, size = 0x4, scoped, tag = 'scoped memory for graph_gru_forward.1']
    #allocation13 [shape = 'u8[65536]{0}', space=vmem, size = 0x10000, scoped, tag = 'input window, operand 6, single buffered']
    #allocation14 [shape = 'u8[65536]{0}', space=vmem, size = 0x10000, scoped, tag = 'input window, operand 7, single buffered']
    #allocation15 [shape = 's32[1]{0}', space=sflag, size = 0x4, scoped, tag = 'scoped memory for graph_gru_forward.1']
    #allocation16 [shape = 'u8[8192]{0}', space=vmem, size = 0x2000, scoped, tag = 'output window, operand 0, single buffered']
    %13 = vsyncpa [#allocation3], 0
    %14 = vsyncpa [#allocation6], 0
    %15 = vsyncpa [#allocation9], 0
    %16 = vsyncpa [#allocation12], 0
    %17 = vsyncpa [#allocation15], 0
    %18 = vsyncpa [#allocation4], 0
    // Predicated region
    $region2: #{graph_gru_forward.1} parent=1 // pred_check
      _
    $region3: #{graph_gru_forward.1} parent=1 // pred_check_branch
      %20 = sbr.rel (0) target = $region5
    $region4: #{graph_gru_forward.1} parent=1 // pred_region
      %s22 = ssub.s32 256, 256
      %23 = vsyncadd [#allocation3], %s22
      %s24 = sshll.u32 [#allocation2], 4
      %s25 = int_to_ptr.vmem [resolvable:$true] %s24
      %30 = dma.hbm_to_vmem [thread:$0]  %s0, 256, %s25, [#allocation3], 128, 128, 8
    $region5: #{graph_gru_forward.1} parent=1 // pred_fallthru
      _
    // Predicated region
    $region6: #{graph_gru_forward.1} parent=1 // pred_check
      _
    $region7: #{graph_gru_forward.1} parent=1 // pred_check_branch
      %32 = sbr.rel (0) target = $region9
    $region8: #{graph_gru_forward.1} parent=1 // pred_region
      %s34 = ssub.s32 256, 256
      %35 = vsyncadd [#allocation6], %s34
      %s36 = sshll.u32 [#allocation5], 4
      %s37 = int_to_ptr.vmem [resolvable:$true] %s36
      %42 = dma.hbm_to_vmem [thread:$0]  %s1, 256, %s37, [#allocation6], 128, 128, 8
    $region9: #{graph_gru_forward.1} parent=1 // pred_fallthru
      _
    // Predicated region
    $region10: #{graph_gru_forward.1} parent=1 // pred_check
      _
    $region11: #{graph_gru_forward.1} parent=1 // pred_check_branch
      %44 = sbr.rel (0) target = $region13
    $region12: #{graph_gru_forward.1} parent=1 // pred_region
      %s46 = ssub.s32 1280, 1280
      %47 = vsyncadd [#allocation6], %s46
      %s48 = sshll.u32 [#allocation7], 4
      %s49 = int_to_ptr.vmem [resolvable:$true] %s48
      %54 = dma.hbm_to_vmem [thread:$0]  %s2, 1280, %s49, [#allocation6], 128, 128, 8
    $region13: #{graph_gru_forward.1} parent=1 // pred_fallthru
      _
    // Predicated region
    $region14: #{graph_gru_forward.1} parent=1 // pred_check
      _
    $region15: #{graph_gru_forward.1} parent=1 // pred_check_branch
      %56 = sbr.rel (0) target = $region17
    $region16: #{graph_gru_forward.1} parent=1 // pred_region
      %s58 = ssub.s32 384, 384
      %59 = vsyncadd [#allocation9], %s58
      %s61 = sshll.u32 [#allocation8], 4
      %s62 = int_to_ptr.vmem [resolvable:$true] %s61
      %64 = dma.hbm_to_vmem [thread:$0]  %s3, 384, %s62, [#allocation9]
    $region17: #{graph_gru_forward.1} parent=1 // pred_fallthru
      _
    // Predicated region
    $region18: #{graph_gru_forward.1} parent=1 // pred_check
      _
    $region19: #{graph_gru_forward.1} parent=1 // pred_check_branch
      %66 = sbr.rel (0) target = $region21
    $region20: #{graph_gru_forward.1} parent=1 // pred_region
      %s68 = ssub.s32 48, 48
      %69 = vsyncadd [#allocation9], %s68
      %s71 = sshll.u32 [#allocation10], 4
      %s72 = int_to_ptr.vmem [resolvable:$true] %s71
      %74 = dma.hbm_to_vmem [thread:$0]  %s4, 48, %s72, [#allocation9]
    $region21: #{graph_gru_forward.1} parent=1 // pred_fallthru
      _
    // Predicated region
    $region22: #{graph_gru_forward.1} parent=1 // pred_check
      _
    $region23: #{graph_gru_forward.1} parent=1 // pred_check_branch
      %76 = sbr.rel (0) target = $region25
    $region24: #{graph_gru_forward.1} parent=1 // pred_region
      %s78 = ssub.s32 2048, 2048
      %79 = vsyncadd [#allocation12], %s78
      %s80 = sshll.u32 [#allocation11], 4
      %s81 = int_to_ptr.vmem [resolvable:$true] %s80
      %86 = dma.hbm_to_vmem [thread:$0]  %s5, 2048, %s81, [#allocation12], 128, 128, 8
    $region25: #{graph_gru_forward.1} parent=1 // pred_fallthru
      _
    // Predicated region
    $region26: #{graph_gru_forward.1} parent=1 // pred_check
      _
    $region27: #{graph_gru_forward.1} parent=1 // pred_check_branch
      %88 = sbr.rel (0) target = $region29
    $region28: #{graph_gru_forward.1} parent=1 // pred_region
      %s90 = ssub.s32 2048, 2048
      %91 = vsyncadd [#allocation12], %s90
      %s92 = sshll.u32 [#allocation13], 4
      %s93 = int_to_ptr.vmem [resolvable:$true] %s92
      %98 = dma.hbm_to_vmem [thread:$0]  %s6, 2048, %s93, [#allocation12], 128, 128, 8
    $region29: #{graph_gru_forward.1} parent=1 // pred_fallthru
      _
    // Predicated region
    $region30: #{graph_gru_forward.1} parent=1 // pred_check
      _
    $region31: #{graph_gru_forward.1} parent=1 // pred_check_branch
      %100 = sbr.rel (0) target = $region33
    $region32: #{graph_gru_forward.1} parent=1 // pred_region
      %s102 = ssub.s32 2048, 2048
      %103 = vsyncadd [#allocation15], %s102
      %s104 = sshll.u32 [#allocation14], 4
      %s105 = int_to_ptr.vmem [resolvable:$true] %s104
      %110 = dma.hbm_to_vmem [thread:$0]  %s7, 2048, %s105, [#allocation15], 128, 128, 8
    $region33: #{graph_gru_forward.1} parent=1 // pred_fallthru
      _
    // Predicated region
    $region34: #{graph_gru_forward.1} parent=1 // pred_check
      _
    $region35: #{graph_gru_forward.1} parent=1 // pred_check_branch
      %112 = sbr.rel (0) target = $region37
    $region36: #{graph_gru_forward.1} parent=1 // pred_region
      %113 = dma.done [#allocation3], 256
    $region37: #{graph_gru_forward.1} parent=1 // pred_fallthru
      _
    // Predicated region
    $region38: #{graph_gru_forward.1} parent=1 // pred_check
      _
    $region39: #{graph_gru_forward.1} parent=1 // pred_check_branch
      %115 = sbr.rel (0) target = $region41
    $region40: #{graph_gru_forward.1} parent=1 // pred_region
      %116 = dma.done [#allocation6], 256
    $region41: #{graph_gru_forward.1} parent=1 // pred_fallthru
      _
    // Predicated region
    $region42: #{graph_gru_forward.1} parent=1 // pred_check
      _
    $region43: #{graph_gru_forward.1} parent=1 // pred_check_branch
      %118 = sbr.rel (0) target = $region45
    $region44: #{graph_gru_forward.1} parent=1 // pred_region
      %119 = dma.done [#allocation6], 1280
    $region45: #{graph_gru_forward.1} parent=1 // pred_fallthru
      _
    // Predicated region
    $region46: #{graph_gru_forward.1} parent=1 // pred_check
      _
    $region47: #{graph_gru_forward.1} parent=1 // pred_check_branch
      %121 = sbr.rel (0) target = $region49
    $region48: #{graph_gru_forward.1} parent=1 // pred_region
      %122 = dma.done [#allocation9], 384
    $region49: #{graph_gru_forward.1} parent=1 // pred_fallthru
      _
    // Predicated region
    $region50: #{graph_gru_forward.1} parent=1 // pred_check
      _
    $region51: #{graph_gru_forward.1} parent=1 // pred_check_branch
      %124 = sbr.rel (0) target = $region53
    $region52: #{graph_gru_forward.1} parent=1 // pred_region
      %125 = dma.done [#allocation9], 48
    $region53: #{graph_gru_forward.1} parent=1 // pred_fallthru
      _
    // Predicated region
    $region54: #{graph_gru_forward.1} parent=1 // pred_check
      _
    $region55: #{graph_gru_forward.1} parent=1 // pred_check_branch
      %127 = sbr.rel (0) target = $region57
    $region56: #{graph_gru_forward.1} parent=1 // pred_region
      %128 = dma.done [#allocation12], 2048
    $region57: #{graph_gru_forward.1} parent=1 // pred_fallthru
      _
    // Predicated region
    $region58: #{graph_gru_forward.1} parent=1 // pred_check
      _
    $region59: #{graph_gru_forward.1} parent=1 // pred_check_branch
      %130 = sbr.rel (0) target = $region61
    $region60: #{graph_gru_forward.1} parent=1 // pred_region
      %131 = dma.done [#allocation12], 2048
    $region61: #{graph_gru_forward.1} parent=1 // pred_fallthru
      _
    // Predicated region
    $region62: #{graph_gru_forward.1} parent=1 // pred_check
      _
    $region63: #{graph_gru_forward.1} parent=1 // pred_check_branch
      %133 = sbr.rel (0) target = $region65
    $region64: #{graph_gru_forward.1} parent=1 // pred_region
      %134 = dma.done [#allocation15], 2048
    $region65: #{graph_gru_forward.1} parent=1 // pred_fallthru
      _
    %v135 = vld [vmem:[#allocation5] sm:$0xff]
    %v136 = vld [vmem:[#allocation5 + $0x8] sm:$0xff]
    %v137 = vld [vmem:[#allocation8] sm:$0xff]
    %v138 = vld [vmem:[#allocation8 + $0x8] sm:$0xff]
    %v139 = vld [vmem:[#allocation8 + $0x10] sm:$0xff]
    %v140 = vld [vmem:[#allocation10] sm:$0x7]
    %v142 = vlaneseq
    %v143 = vshrl.u32 %v142, 7
    %v144 = vsub.s32 0, %v143
    %v145 = vrot.slane %v140, %v144
    %v146 = vlaneseq
    %v147 = vshrl.u32 %v146, 7
    %v148 = vsub.s32 1, %v147
    %v149 = vrot.slane %v140, %v148
    %v150 = vlaneseq
    %v151 = vshrl.u32 %v150, 7
    %v152 = vsub.s32 2, %v151
    %v153 = vrot.slane %v140, %v152
    %vm157 = vcmask 64512
    %v159 = vsel %vm157, %v135, 0
    %v162 = vsel %vm157, %v136, 0
    %164 = vmatprep.subr.mxu0 %v138
    %165 = vmatpush1.msra.mxu0 %v137
    %166 = vmatprep.subr.mxu0 0.0
    %167 = vmatpush1.msra.mxu0 0.0
    %168 = vmatprep.subr.mxu0 0.0
    %169 = vmatpush1.msra.mxu0 0.0
    %170 = vmatprep.subr.mxu0 0.0
    %171 = vmatpush1.msra.mxu0 0.0
    %172 = vmatprep.subr.mxu0 0.0
    %173 = vmatpush1.msra.mxu0 0.0
    %174 = vmatprep.subr.mxu0 0.0
    %175 = vmatpush1.msra.mxu0 0.0
    %176 = vmatprep.subr.mxu0 0.0
    %177 = vmatpush1.msra.mxu0 0.0
    %178 = vmatprep.subr.mxu0 0.0
    %179 = vmatpush1.msra.mxu0 0.0
    %180 = vmatprep.subr.mxu0 0.0
    %181 = vmatpush1.msra.mxu0 0.0
    %182 = vmatprep.subr.mxu0 0.0
    %183 = vmatpush1.msra.mxu0 0.0
    %184 = vmatprep.subr.mxu0 0.0
    %185 = vmatpush1.msra.mxu0 0.0
    %186 = vmatprep.subr.mxu0 0.0
    %187 = vmatpush1.msra.mxu0 0.0
    %188 = vmatprep.subr.mxu0 0.0
    %189 = vmatpush1.msra.mxu0 0.0
    %190 = vmatprep.subr.mxu0 0.0
    %191 = vmatpush1.msra.mxu0 0.0
    %192 = vmatprep.subr.mxu0 0.0
    %193 = vmatpush1.msra.mxu0 0.0
    %194 = vmatprep.subr.mxu0 0.0
    %195 = vmatpush1.msra.mxu0 0.0
    %196 = vmatprep.subr.mxu0 0.0
    %197 = vmatpush1.msra.mxu0 0.0
    %198 = vmatprep.subr.mxu0 0.0
    %199 = vmatpush1.msra.mxu0 0.0
    %200 = vmatprep.subr.mxu0 0.0
    %201 = vmatpush1.msra.mxu0 0.0
    %202 = vmatprep.subr.mxu0 0.0
    %203 = vmatpush1.msra.mxu0 0.0
    %204 = vmatprep.subr.mxu0 0.0
    %205 = vmatpush1.msra.mxu0 0.0
    %206 = vmatprep.subr.mxu0 0.0
    %207 = vmatpush1.msra.mxu0 0.0
    %208 = vmatprep.subr.mxu0 0.0
    %209 = vmatpush1.msra.mxu0 0.0
    %210 = vmatprep.subr.mxu0 0.0
    %211 = vmatpush1.msra.mxu0 0.0
    %212 = vmatprep.subr.mxu0 0.0
    %213 = vmatpush1.msra.mxu0 0.0
    %214 = vmatprep.subr.mxu0 0.0
    %215 = vmatpush1.msra.mxu0 0.0
    %216 = vmatprep.subr.mxu0 0.0
    %217 = vmatpush1.msra.mxu0 0.0
    %218 = vmatprep.subr.mxu0 0.0
    %219 = vmatpush1.msra.mxu0 0.0
    %220 = vmatprep.subr.mxu0 0.0
    %221 = vmatpush1.msra.mxu0 0.0
    %222 = vmatprep.subr.mxu0 0.0
    %223 = vmatpush1.msra.mxu0 0.0
    %224 = vmatprep.subr.mxu0 0.0
    %225 = vmatpush1.msra.mxu0 0.0
    %226 = vmatprep.subr.mxu0 0.0
    %227 = vmatpush1.msra.mxu0 0.0
    %228 = vmatprep.mubr.f32.mxu0 0.0
    %229 = vmatmul.mubr.f32.gmra.mrb[0].mxu0 %v159
    %v230 = vpop.f32.mrb[0].mxu0
    %v231 = vadd.f32 %v145, %v230
    %v232 = vpop.f32.mrb[0].mxu0
    %v233 = vadd.f32 %v149, %v232
    %234 = vmatprep.mubr.f32.mxu0 0.0
    %235 = vmatmul.mubr.f32.gmra.mrb[0].mxu0 %v162
    %v236 = vpop.f32.mrb[0].mxu0
    %v237 = vadd.f32 %v145, %v236
    %v238 = vpop.f32.mrb[0].mxu0
    %v239 = vadd.f32 %v149, %v238
    %240 = vdwg.mxu0
    %241 = vmatprep.subr.mxu0 0.0
    %242 = vmatpush1.msra.mxu0 %v139
    %243 = vmatprep.subr.mxu0 0.0
    %244 = vmatpush1.msra.mxu0 0.0
    %245 = vmatprep.subr.mxu0 0.0
    %246 = vmatpush1.msra.mxu0 0.0
    %247 = vmatprep.subr.mxu0 0.0
    %248 = vmatpush1.msra.mxu0 0.0
    %249 = vmatprep.subr.mxu0 0.0
    %250 = vmatpush1.msra.mxu0 0.0
    %251 = vmatprep.subr.mxu0 0.0
    %252 = vmatpush1.msra.mxu0 0.0
    %253 = vmatprep.subr.mxu0 0.0
    %254 = vmatpush1.msra.mxu0 0.0
    %255 = vmatprep.subr.mxu0 0.0
    %256 = vmatpush1.msra.mxu0 0.0
    %257 = vmatprep.subr.mxu0 0.0
    %258 = vmatpush1.msra.mxu0 0.0
    %259 = vmatprep.subr.mxu0 0.0
    %260 = vmatpush1.msra.mxu0 0.0
    %261 = vmatprep.subr.mxu0 0.0
    %262 = vmatpush1.msra.mxu0 0.0
    %263 = vmatprep.subr.mxu0 0.0
    %264 = vmatpush1.msra.mxu0 0.0
    %265 = vmatprep.subr.mxu0 0.0
    %266 = vmatpush1.msra.mxu0 0.0
    %267 = vmatprep.subr.mxu0 0.0
    %268 = vmatpush1.msra.mxu0 0.0
    %269 = vmatprep.subr.mxu0 0.0
    %270 = vmatpush1.msra.mxu0 0.0
    %271 = vmatprep.subr.mxu0 0.0
    %272 = vmatpush1.msra.mxu0 0.0
    %273 = vmatprep.subr.mxu0 0.0
    %274 = vmatpush1.msra.mxu0 0.0
    %275 = vmatprep.subr.mxu0 0.0
    %276 = vmatpush1.msra.mxu0 0.0
    %277 = vmatprep.subr.mxu0 0.0
    %278 = vmatpush1.msra.mxu0 0.0
    %279 = vmatprep.subr.mxu0 0.0
    %280 = vmatpush1.msra.mxu0 0.0
    %281 = vmatprep.subr.mxu0 0.0
    %282 = vmatpush1.msra.mxu0 0.0
    %283 = vmatprep.subr.mxu0 0.0
    %284 = vmatpush1.msra.mxu0 0.0
    %285 = vmatprep.subr.mxu0 0.0
    %286 = vmatpush1.msra.mxu0 0.0
    %287 = vmatprep.subr.mxu0 0.0
    %288 = vmatpush1.msra.mxu0 0.0
    %289 = vmatprep.subr.mxu0 0.0
    %290 = vmatpush1.msra.mxu0 0.0
    %291 = vmatprep.subr.mxu0 0.0
    %292 = vmatpush1.msra.mxu0 0.0
    %293 = vmatprep.subr.mxu0 0.0
    %294 = vmatpush1.msra.mxu0 0.0
    %295 = vmatprep.subr.mxu0 0.0
    %296 = vmatpush1.msra.mxu0 0.0
    %297 = vmatprep.subr.mxu0 0.0
    %298 = vmatpush1.msra.mxu0 0.0
    %299 = vmatprep.subr.mxu0 0.0
    %300 = vmatpush1.msra.mxu0 0.0
    %301 = vmatprep.subr.mxu0 0.0
    %302 = vmatpush1.msra.mxu0 0.0
    %303 = vmatprep.subr.mxu0 0.0
    %304 = vmatpush1.msra.mxu0 0.0
    %305 = vmatprep.mubr.f32.mxu0 0.0
    %306 = vmatmul.mubr.f32.gmra.mrb[0].mxu0 %v159
    %v307 = vpop.f32.mrb[0].mxu0
    %v308 = vadd.f32 %v153, %v307
    %v309 = vpop.f32.mrb[0].mxu0
    %310 = vmatprep.mubr.f32.mxu0 0.0
    %311 = vmatmul.mubr.f32.gmra.mrb[0].mxu0 %v162
    %v312 = vpop.f32.mrb[0].mxu0
    %v313 = vadd.f32 %v153, %v312
    %v314 = vpop.f32.mrb[0].mxu0
    %315 = vdwg.mxu0
    %v316 = vld [vmem:[#allocation11] sm:$0xff]
    %v317 = vld [vmem:[#allocation11 + $0x8] sm:$0xff]
    %v318 = vld [vmem:[#allocation11 + $0x10] sm:$0xff]
    %v319 = vld [vmem:[#allocation11 + $0x18] sm:$0xff]
    %v320 = vld [vmem:[#allocation11 + $0x20] sm:$0xff]
    %v321 = vld [vmem:[#allocation11 + $0x28] sm:$0xff]
    %v322 = vld [vmem:[#allocation11 + $0x30] sm:$0xff]
    %v323 = vld [vmem:[#allocation11 + $0x38] sm:$0xff]
    %v324 = vld [vmem:[#allocation11 + $0x40] sm:$0xff]
    %v325 = vld [vmem:[#allocation11 + $0x48] sm:$0xff]
    %v326 = vld [vmem:[#allocation11 + $0x50] sm:$0xff]
    %v327 = vld [vmem:[#allocation11 + $0x58] sm:$0xff]
    %v328 = vld [vmem:[#allocation11 + $0x60] sm:$0xff]
    %v329 = vld [vmem:[#allocation11 + $0x68] sm:$0xff]
    %v330 = vld [vmem:[#allocation11 + $0x70] sm:$0xff]
    %v331 = vld [vmem:[#allocation11 + $0x78] sm:$0xff]
    %v332 = vld [vmem:[#allocation13] sm:$0xff]
    %v333 = vld [vmem:[#allocation13 + $0x8] sm:$0xff]
    %v334 = vld [vmem:[#allocation13 + $0x10] sm:$0xff]
    %v335 = vld [vmem:[#allocation13 + $0x18] sm:$0xff]
    %v336 = vld [vmem:[#allocation13 + $0x20] sm:$0xff]
    %v337 = vld [vmem:[#allocation13 + $0x28] sm:$0xff]
    %v338 = vld [vmem:[#allocation13 + $0x30] sm:$0xff]
    %v339 = vld [vmem:[#allocation13 + $0x38] sm:$0xff]
    %v340 = vld [vmem:[#allocation13 + $0x40] sm:$0xff]
    %v341 = vld [vmem:[#allocation13 + $0x48] sm:$0xff]
    %v342 = vld [vmem:[#allocation13 + $0x50] sm:$0xff]
    %v343 = vld [vmem:[#allocation13 + $0x58] sm:$0xff]
    %v344 = vld [vmem:[#allocation13 + $0x60] sm:$0xff]
    %v345 = vld [vmem:[#allocation13 + $0x68] sm:$0xff]
    %v346 = vld [vmem:[#allocation13 + $0x70] sm:$0xff]
    %v347 = vld [vmem:[#allocation13 + $0x78] sm:$0xff]
    %v348 = vld [vmem:[#allocation14] sm:$0xff]
    %v349 = vld [vmem:[#allocation14 + $0x8] sm:$0xff]
    %v350 = vld [vmem:[#allocation14 + $0x10] sm:$0xff]
    %v351 = vld [vmem:[#allocation14 + $0x18] sm:$0xff]
    %v352 = vld [vmem:[#allocation14 + $0x20] sm:$0xff]
    %v353 = vld [vmem:[#allocation14 + $0x28] sm:$0xff]
    %v354 = vld [vmem:[#allocation14 + $0x30] sm:$0xff]
    %v355 = vld [vmem:[#allocation14 + $0x38] sm:$0xff]
    %v356 = vld [vmem:[#allocation14 + $0x40] sm:$0xff]
    %v357 = vld [vmem:[#allocation14 + $0x48] sm:$0xff]
    %v358 = vld [vmem:[#allocation14 + $0x50] sm:$0xff]
    %v359 = vld [vmem:[#allocation14 + $0x58] sm:$0xff]
    %v360 = vld [vmem:[#allocation14 + $0x60] sm:$0xff]
    %v361 = vld [vmem:[#allocation14 + $0x68] sm:$0xff]
    %v362 = vld [vmem:[#allocation14 + $0x70] sm:$0xff]
    %v363 = vld [vmem:[#allocation14 + $0x78] sm:$0xff]
    %v364 = vld [vmem:[#allocation7] sm:$0xff]
    %v365 = vld [vmem:[#allocation7 + $0x8] sm:$0xff]
    %v366 = vld [vmem:[#allocation7 + $0x10] sm:$0xff]
    %v367 = vld [vmem:[#allocation7 + $0x18] sm:$0xff]
    %v368 = vld [vmem:[#allocation7 + $0x20] sm:$0xff]
    %v369 = vld [vmem:[#allocation7 + $0x28] sm:$0xff]
    %v370 = vld [vmem:[#allocation7 + $0x30] sm:$0xff]
    %v371 = vld [vmem:[#allocation7 + $0x38] sm:$0xff]
    %v372 = vld [vmem:[#allocation7 + $0x40] sm:$0xff]
    %v373 = vld [vmem:[#allocation7 + $0x48] sm:$0xff]
    %v374 = vlaneseq
    %v375 = vshrl.u32 %v374, 7
    %v376 = vadd.s32 %v375, 8
    %vm377 = vcmp.ne.s32.totalorder %v375, 0
    %vm378 = vcmp.ne.s32.totalorder %v376, 0
    %v379 = vsel %vm377, 1, 0
    %v380 = vsel %vm378, 1, 0
    %v381 = vcvt.s32.f32 %v379
    %v382 = vcvt.s32.f32 %v380
    %v383 = vld [vmem:[#allocation2] sm:$0xff]
    %v384 = vld [vmem:[#allocation2 + $0x8] sm:$0xff]
    %vm385 = vcmask 130048
    %v387 = vsel %vm385, %v364, 0
    %v390 = vsel %vm385, %v365, 0
    %v393 = vsel %vm385, %v366, 0
    %v396 = vsel %vm385, %v367, 0
    %v399 = vsel %vm385, %v368, 0
    %v402 = vsel %vm385, %v369, 0
    %v405 = vsel %vm385, %v370, 0
    %v408 = vsel %vm385, %v371, 0
    %v411 = vsel %vm385, %v372, 0
    %v414 = vsel %vm385, %v373, 0
    %416 = vmatprep.subr.mxu0 0.0
    %417 = vmatpush1.msra.mxu0 %v383
    %418 = vmatprep.subr.mxu0 0.0
    %419 = vmatpush1.msra.mxu0 %v384
    %420 = vmatprep.subr.mxu0 0.0
    %421 = vmatpush1.msra.mxu0 0.0
    %422 = vmatprep.subr.mxu0 0.0
    %423 = vmatpush1.msra.mxu0 0.0
    %424 = vmatprep.subr.mxu0 0.0
    %425 = vmatpush1.msra.mxu0 0.0
    %426 = vmatprep.subr.mxu0 0.0
    %427 = vmatpush1.msra.mxu0 0.0
    %428 = vmatprep.subr.mxu0 0.0
    %429 = vmatpush1.msra.mxu0 0.0
    %430 = vmatprep.subr.mxu0 0.0
    %431 = vmatpush1.msra.mxu0 0.0
    %432 = vmatprep.subr.mxu0 0.0
    %433 = vmatpush1.msra.mxu0 0.0
    %434 = vmatprep.subr.mxu0 0.0
    %435 = vmatpush1.msra.mxu0 0.0
    %436 = vmatprep.subr.mxu0 0.0
    %437 = vmatpush1.msra.mxu0 0.0
    %438 = vmatprep.subr.mxu0 0.0
    %439 = vmatpush1.msra.mxu0 0.0
    %440 = vmatprep.subr.mxu0 0.0
    %441 = vmatpush1.msra.mxu0 0.0
    %442 = vmatprep.subr.mxu0 0.0
    %443 = vmatpush1.msra.mxu0 0.0
    %444 = vmatprep.subr.mxu0 0.0
    %445 = vmatpush1.msra.mxu0 0.0
    %446 = vmatprep.subr.mxu0 0.0
    %447 = vmatpush1.msra.mxu0 0.0
    %448 = vmatprep.subr.mxu0 0.0
    %449 = vmatpush1.msra.mxu0 0.0
    %450 = vmatprep.subr.mxu0 0.0
    %451 = vmatpush1.msra.mxu0 0.0
    %452 = vmatprep.subr.mxu0 0.0
    %453 = vmatpush1.msra.mxu0 0.0
    %454 = vmatprep.subr.mxu0 0.0
    %455 = vmatpush1.msra.mxu0 0.0
    %456 = vmatprep.subr.mxu0 0.0
    %457 = vmatpush1.msra.mxu0 0.0
    %458 = vmatprep.subr.mxu0 0.0
    %459 = vmatpush1.msra.mxu0 0.0
    %460 = vmatprep.subr.mxu0 0.0
    %461 = vmatpush1.msra.mxu0 0.0
    %462 = vmatprep.subr.mxu0 0.0
    %463 = vmatpush1.msra.mxu0 0.0
    %464 = vmatprep.subr.mxu0 0.0
    %465 = vmatpush1.msra.mxu0 0.0
    %466 = vmatprep.subr.mxu0 0.0
    %467 = vmatpush1.msra.mxu0 0.0
    %468 = vmatprep.subr.mxu0 0.0
    %469 = vmatpush1.msra.mxu0 0.0
    %470 = vmatprep.subr.mxu0 0.0
    %471 = vmatpush1.msra.mxu0 0.0
    %472 = vmatprep.subr.mxu0 0.0
    %473 = vmatpush1.msra.mxu0 0.0
    %474 = vmatprep.subr.mxu0 0.0
    %475 = vmatpush1.msra.mxu0 0.0
    %476 = vmatprep.subr.mxu0 0.0
    %477 = vmatpush1.msra.mxu0 0.0
    %478 = vmatprep.subr.mxu0 0.0
    %479 = vmatpush1.msra.mxu0 0.0
    %480 = vmatprep.mubr.f32.mxu0 0.0
    %481 = vmatmul.mubr.f32.gmra.mrb[0].mxu0 %v387
    %v482 = vpop.f32.mrb[0].mxu0
    %v483 = vadd.f32 0.0, %v482
    %v484 = vpop.f32.mrb[0].mxu0
    %485 = vmatprep.mubr.f32.mxu0 0.0
    %486 = vmatmul.mubr.f32.gmra.mrb[0].mxu0 %v390
    %v487 = vpop.f32.mrb[0].mxu0
    %v488 = vadd.f32 0.0, %v487
    %v489 = vpop.f32.mrb[0].mxu0
    %490 = vmatprep.mubr.f32.mxu0 0.0
    %491 = vmatmul.mubr.f32.gmra.mrb[0].mxu0 %v393
    %v492 = vpop.f32.mrb[0].mxu0
    %v493 = vadd.f32 0.0, %v492
    %v494 = vpop.f32.mrb[0].mxu0
    %495 = vmatprep.mubr.f32.mxu0 0.0
    %496 = vmatmul.mubr.f32.gmra.mrb[0].mxu0 %v396
    %v497 = vpop.f32.mrb[0].mxu0
    %v498 = vadd.f32 0.0, %v497
    %v499 = vpop.f32.mrb[0].mxu0
    %500 = vmatprep.mubr.f32.mxu0 0.0
    %501 = vmatmul.mubr.f32.gmra.mrb[0].mxu0 %v399
    %v502 = vpop.f32.mrb[0].mxu0
    %v503 = vadd.f32 0.0, %v502
    %v504 = vpop.f32.mrb[0].mxu0
    %505 = vmatprep.mubr.f32.mxu0 0.0
    %506 = vmatmul.mubr.f32.gmra.mrb[0].mxu0 %v402
    %v507 = vpop.f32.mrb[0].mxu0
    %v508 = vadd.f32 0.0, %v507
    %v509 = vpop.f32.mrb[0].mxu0
    %510 = vmatprep.mubr.f32.mxu0 0.0
    %511 = vmatmul.mubr.f32.gmra.mrb[0].mxu0 %v405
    %v512 = vpop.f32.mrb[0].mxu0
    %v513 = vadd.f32 0.0, %v512
    %v514 = vpop.f32.mrb[0].mxu0
    %515 = vmatprep.mubr.f32.mxu0 0.0
    %516 = vmatmul.mubr.f32.gmra.mrb[0].mxu0 %v408
    %v517 = vpop.f32.mrb[0].mxu0
    %v518 = vadd.f32 0.0, %v517
    %v519 = vpop.f32.mrb[0].mxu0
    %520 = vmatprep.mubr.f32.mxu0 0.0
    %521 = vmatmul.mubr.f32.gmra.mrb[0].mxu0 %v411
    %v522 = vpop.f32.mrb[0].mxu0
    %v523 = vadd.f32 0.0, %v522
    %v524 = vpop.f32.mrb[0].mxu0
    %525 = vmatprep.mubr.f32.mxu0 0.0
    %526 = vmatmul.mubr.f32.gmra.mrb[0].mxu0 %v414
    %v527 = vpop.f32.mrb[0].mxu0
    %v528 = vadd.f32 0.0, %v527
    %v529 = vpop.f32.mrb[0].mxu0
    %530 = vdwg.mxu0
    %531 = vmatprep.subr.mxu0 0.0
    %532 = vmatpush1.msra.mxu0 %v316
    %533 = vmatprep.subr.mxu0 0.0
    %534 = vmatpush1.msra.mxu0 %v317
    %535 = vmatprep.subr.mxu0 0.0
    %536 = vmatpush1.msra.mxu0 %v318
    %537 = vmatprep.subr.mxu0 0.0
    %538 = vmatpush1.msra.mxu0 %v319
    %539 = vmatprep.subr.mxu0 0.0
    %540 = vmatpush1.msra.mxu0 %v320
    %541 = vmatprep.subr.mxu0 0.0
    %542 = vmatpush1.msra.mxu0 %v321
    %543 = vmatprep.subr.mxu0 0.0
    %544 = vmatpush1.msra.mxu0 %v322
    %545 = vmatprep.subr.mxu0 0.0
    %546 = vmatpush1.msra.mxu0 %v323
    %547 = vmatprep.subr.mxu0 0.0
    %548 = vmatpush1.msra.mxu0 %v324
    %549 = vmatprep.subr.mxu0 0.0
    %550 = vmatpush1.msra.mxu0 %v325
    %551 = vmatprep.subr.mxu0 0.0
    %552 = vmatpush1.msra.mxu0 %v326
    %553 = vmatprep.subr.mxu0 0.0
    %554 = vmatpush1.msra.mxu0 %v327
    %555 = vmatprep.subr.mxu0 0.0
    %556 = vmatpush1.msra.mxu0 %v328
    %557 = vmatprep.subr.mxu0 0.0
    %558 = vmatpush1.msra.mxu0 %v329
    %559 = vmatprep.subr.mxu0 0.0
    %560 = vmatpush1.msra.mxu0 %v330
    %561 = vmatprep.subr.mxu0 0.0
    %562 = vmatpush1.msra.mxu0 %v331
    %563 = vmatprep.subr.mxu0 0.0
    %564 = vmatpush1.msra.mxu0 0.0
    %565 = vmatprep.subr.mxu0 0.0
    %566 = vmatpush1.msra.mxu0 0.0
    %567 = vmatprep.subr.mxu0 0.0
    %568 = vmatpush1.msra.mxu0 0.0
    %569 = vmatprep.subr.mxu0 0.0
    %570 = vmatpush1.msra.mxu0 0.0
    %571 = vmatprep.subr.mxu0 0.0
    %572 = vmatpush1.msra.mxu0 0.0
    %573 = vmatprep.subr.mxu0 0.0
    %574 = vmatpush1.msra.mxu0 0.0
    %575 = vmatprep.subr.mxu0 0.0
    %576 = vmatpush1.msra.mxu0 0.0
    %577 = vmatprep.subr.mxu0 0.0
    %578 = vmatpush1.msra.mxu0 0.0
    %579 = vmatprep.subr.mxu0 0.0
    %580 = vmatpush1.msra.mxu0 0.0
    %581 = vmatprep.subr.mxu0 0.0
    %582 = vmatpush1.msra.mxu0 0.0
    %583 = vmatprep.subr.mxu0 0.0
    %584 = vmatpush1.msra.mxu0 0.0
    %585 = vmatprep.subr.mxu0 0.0
    %586 = vmatpush1.msra.mxu0 0.0
    %587 = vmatprep.subr.mxu0 0.0
    %588 = vmatpush1.msra.mxu0 0.0
    %589 = vmatprep.subr.mxu0 0.0
    %590 = vmatpush1.msra.mxu0 0.0
    %591 = vmatprep.subr.mxu0 0.0
    %592 = vmatpush1.msra.mxu0 0.0
    %593 = vmatprep.subr.mxu0 0.0
    %594 = vmatpush1.msra.mxu0 0.0
    %595 = vmatprep.mubr.f32.mxu0 0.0
    %596 = vmatmul.mubr.f32.gmra.mrb[0].mxu0 %v483
    %v597 = vpop.f32.mrb[0].mxu0
    %v598 = vadd.f32 0.0, %v597
    %v599 = vpop.f32.mrb[0].mxu0
    %600 = vmatprep.mubr.f32.mxu0 0.0
    %601 = vmatmul.mubr.f32.gmra.mrb[0].mxu0 %v488
    %v602 = vpop.f32.mrb[0].mxu0
    %v603 = vadd.f32 0.0, %v602
    %v604 = vpop.f32.mrb[0].mxu0
    %605 = vdwg.mxu0
    %v606 = vadd.f32 %v231, %v598
    %v607 = vadd.f32 %v237, %v603
    %v608 = vxor.u32 %v606, 2147483648
    %v609 = vxor.u32 %v607, 2147483648
    %v610 = vmul.f32 %v608, 1.442695
    %v611 = vpow.pop %v610
    %v612 = vmul.f32 %v609, 1.442695
    %v613 = vpow.pop %v612
    %v614 = vadd.f32 %v611, 1.0
    %v615 = vadd.f32 %v613, 1.0
    %v616 = vrcp.pop %v614
    %v617 = vmul.f32 1.0, %v616
    %v618 = vrcp.pop %v615
    %v619 = vmul.f32 1.0, %v618
    %620 = vmatprep.subr.mxu0 0.0
    %621 = vmatpush1.msra.mxu0 %v332
    %622 = vmatprep.subr.mxu0 0.0
    %623 = vmatpush1.msra.mxu0 %v333
    %624 = vmatprep.subr.mxu0 0.0
    %625 = vmatpush1.msra.mxu0 %v334
    %626 = vmatprep.subr.mxu0 0.0
    %627 = vmatpush1.msra.mxu0 %v335
    %628 = vmatprep.subr.mxu0 0.0
    %629 = vmatpush1.msra.mxu0 %v336
    %630 = vmatprep.subr.mxu0 0.0
    %631 = vmatpush1.msra.mxu0 %v337
    %632 = vmatprep.subr.mxu0 0.0
    %633 = vmatpush1.msra.mxu0 %v338
    %634 = vmatprep.subr.mxu0 0.0
    %635 = vmatpush1.msra.mxu0 %v339
    %636 = vmatprep.subr.mxu0 0.0
    %637 = vmatpush1.msra.mxu0 %v340
    %638 = vmatprep.subr.mxu0 0.0
    %639 = vmatpush1.msra.mxu0 %v341
    %640 = vmatprep.subr.mxu0 0.0
    %641 = vmatpush1.msra.mxu0 %v342
    %642 = vmatprep.subr.mxu0 0.0
    %643 = vmatpush1.msra.mxu0 %v343
    %644 = vmatprep.subr.mxu0 0.0
    %645 = vmatpush1.msra.mxu0 %v344
    %646 = vmatprep.subr.mxu0 0.0
    %647 = vmatpush1.msra.mxu0 %v345
    %648 = vmatprep.subr.mxu0 0.0
    %649 = vmatpush1.msra.mxu0 %v346
    %650 = vmatprep.subr.mxu0 0.0
    %651 = vmatpush1.msra.mxu0 %v347
    %652 = vmatprep.subr.mxu0 0.0
    %653 = vmatpush1.msra.mxu0 0.0
    %654 = vmatprep.subr.mxu0 0.0
    %655 = vmatpush1.msra.mxu0 0.0
    %656 = vmatprep.subr.mxu0 0.0
    %657 = vmatpush1.msra.mxu0 0.0
    %658 = vmatprep.subr.mxu0 0.0
    %659 = vmatpush1.msra.mxu0 0.0
    %660 = vmatprep.subr.mxu0 0.0
    %661 = vmatpush1.msra.mxu0 0.0
    %662 = vmatprep.subr.mxu0 0.0
    %663 = vmatpush1.msra.mxu0 0.0
    %664 = vmatprep.subr.mxu0 0.0
    %665 = vmatpush1.msra.mxu0 0.0
    %666 = vmatprep.subr.mxu0 0.0
    %667 = vmatpush1.msra.mxu0 0.0
    %668 = vmatprep.subr.mxu0 0.0
    %669 = vmatpush1.msra.mxu0 0.0
    %670 = vmatprep.subr.mxu0 0.0
    %671 = vmatpush1.msra.mxu0 0.0
    %672 = vmatprep.subr.mxu0 0.0
    %673 = vmatpush1.msra.mxu0 0.0
    %674 = vmatprep.subr.mxu0 0.0
    %675 = vmatpush1.msra.mxu0 0.0
    %676 = vmatprep.subr.mxu0 0.0
    %677 = vmatpush1.msra.mxu0 0.0
    %678 = vmatprep.subr.mxu0 0.0
    %679 = vmatpush1.msra.mxu0 0.0
    %680 = vmatprep.subr.mxu0 0.0
    %681 = vmatpush1.msra.mxu0 0.0
    %682 = vmatprep.subr.mxu0 0.0
    %683 = vmatpush1.msra.mxu0 0.0
    %684 = vmatprep.mubr.f32.mxu0 0.0
    %685 = vmatmul.mubr.f32.gmra.mrb[0].mxu0 %v493
    %v686 = vpop.f32.mrb[0].mxu0
    %v687 = vadd.f32 0.0, %v686
    %v688 = vpop.f32.mrb[0].mxu0
    %689 = vmatprep.mubr.f32.mxu0 0.0
    %690 = vmatmul.mubr.f32.gmra.mrb[0].mxu0 %v498
    %v691 = vpop.f32.mrb[0].mxu0
    %v692 = vadd.f32 0.0, %v691
    %v693 = vpop.f32.mrb[0].mxu0
    %694 = vmatprep.mubr.f32.mxu0 0.0
    %695 = vmatmul.mubr.f32.gmra.mrb[0].mxu0 %v503
    %v696 = vpop.f32.mrb[0].mxu0
    %v697 = vadd.f32 0.0, %v696
    %v698 = vpop.f32.mrb[0].mxu0
    %699 = vmatprep.mubr.f32.mxu0 0.0
    %700 = vmatmul.mubr.f32.gmra.mrb[0].mxu0 %v508
    %v701 = vpop.f32.mrb[0].mxu0
    %v702 = vadd.f32 0.0, %v701
    %v703 = vpop.f32.mrb[0].mxu0
    %704 = vmatprep.mubr.f32.mxu0 0.0
    %705 = vmatmul.mubr.f32.gmra.mrb[0].mxu0 %v513
    %v706 = vpop.f32.mrb[0].mxu0
    %v707 = vadd.f32 0.0, %v706
    %v708 = vpop.f32.mrb[0].mxu0
    %709 = vmatprep.mubr.f32.mxu0 0.0
    %710 = vmatmul.mubr.f32.gmra.mrb[0].mxu0 %v518
    %v711 = vpop.f32.mrb[0].mxu0
    %v712 = vadd.f32 0.0, %v711
    %v713 = vpop.f32.mrb[0].mxu0
    %714 = vmatprep.mubr.f32.mxu0 0.0
    %715 = vmatmul.mubr.f32.gmra.mrb[0].mxu0 %v523
    %v716 = vpop.f32.mrb[0].mxu0
    %v717 = vadd.f32 0.0, %v716
    %v718 = vpop.f32.mrb[0].mxu0
    %719 = vmatprep.mubr.f32.mxu0 0.0
    %720 = vmatmul.mubr.f32.gmra.mrb[0].mxu0 %v528
    %v721 = vpop.f32.mrb[0].mxu0
    %v722 = vadd.f32 0.0, %v721
    %v723 = vpop.f32.mrb[0].mxu0
    %724 = vdwg.mxu0
    %v725 = vadd.f32 %v233, %v687
    %v726 = vadd.f32 %v239, %v692
    %v727 = vadd.f32 %v233, %v697
    %v728 = vadd.f32 %v239, %v702
    %v729 = vadd.f32 %v233, %v707
    %v730 = vadd.f32 %v239, %v712
    %v731 = vadd.f32 %v233, %v717
    %v732 = vadd.f32 %v239, %v722
    %v733 = vxor.u32 %v725, 2147483648
    %v734 = vxor.u32 %v726, 2147483648
    %v735 = vxor.u32 %v727, 2147483648
    %v736 = vxor.u32 %v728, 2147483648
    %v737 = vxor.u32 %v729, 2147483648
    %v738 = vxor.u32 %v730, 2147483648
    %v739 = vxor.u32 %v731, 2147483648
    %v740 = vxor.u32 %v732, 2147483648
    %v741 = vmul.f32 %v733, 1.442695
    %v742 = vpow.pop %v741
    %v743 = vmul.f32 %v734, 1.442695
    %v744 = vpow.pop %v743
    %v745 = vmul.f32 %v735, 1.442695
    %v746 = vpow.pop %v745
    %v747 = vmul.f32 %v736, 1.442695
    %v748 = vpow.pop %v747
    %v749 = vmul.f32 %v737, 1.442695
    %v750 = vpow.pop %v749
    %v751 = vmul.f32 %v738, 1.442695
    %v752 = vpow.pop %v751
    %v753 = vmul.f32 %v739, 1.442695
    %v754 = vpow.pop %v753
    %v755 = vmul.f32 %v740, 1.442695
    %v756 = vpow.pop %v755
    %v757 = vadd.f32 %v742, 1.0
    %v758 = vadd.f32 %v744, 1.0
    %v759 = vadd.f32 %v746, 1.0
    %v760 = vadd.f32 %v748, 1.0
    %v761 = vadd.f32 %v750, 1.0
    %v762 = vadd.f32 %v752, 1.0
    %v763 = vadd.f32 %v754, 1.0
    %v764 = vadd.f32 %v756, 1.0
    %v765 = vrcp.pop %v757
    %v766 = vmul.f32 1.0, %v765
    %v767 = vrcp.pop %v758
    %v768 = vmul.f32 1.0, %v767
    %v769 = vrcp.pop %v759
    %v770 = vmul.f32 1.0, %v769
    %v771 = vrcp.pop %v760
    %v772 = vmul.f32 1.0, %v771
    %v773 = vrcp.pop %v761
    %v774 = vmul.f32 1.0, %v773
    %v775 = vrcp.pop %v762
    %v776 = vmul.f32 1.0, %v775
    %v777 = vrcp.pop %v763
    %v778 = vmul.f32 1.0, %v777
    %v779 = vrcp.pop %v764
    %v780 = vmul.f32 1.0, %v779
    %v781 = vmul.f32 %v766, %v493
    %v782 = vmul.f32 %v768, %v498
    %v783 = vmul.f32 %v770, %v503
    %v784 = vmul.f32 %v772, %v508
    %v785 = vmul.f32 %v774, %v513
    %v786 = vmul.f32 %v776, %v518
    %v787 = vmul.f32 %v778, %v523
    %v788 = vmul.f32 %v780, %v528
    %v789 = vadd.f32 %v781, %v783
    %v790 = vadd.f32 %v782, %v784
    %v791 = vadd.f32 %v789, %v785
    %v792 = vadd.f32 %v790, %v786
    %v793 = vadd.f32 %v791, %v787
    %v794 = vadd.f32 %v792, %v788
    %795 = vmatprep.subr.mxu0 0.0
    %796 = vmatpush1.msra.mxu0 %v348
    %797 = vmatprep.subr.mxu0 0.0
    %798 = vmatpush1.msra.mxu0 %v349
    %799 = vmatprep.subr.mxu0 0.0
    %800 = vmatpush1.msra.mxu0 %v350
    %801 = vmatprep.subr.mxu0 0.0
    %802 = vmatpush1.msra.mxu0 %v351
    %803 = vmatprep.subr.mxu0 0.0
    %804 = vmatpush1.msra.mxu0 %v352
    %805 = vmatprep.subr.mxu0 0.0
    %806 = vmatpush1.msra.mxu0 %v353
    %807 = vmatprep.subr.mxu0 0.0
    %808 = vmatpush1.msra.mxu0 %v354
    %809 = vmatprep.subr.mxu0 0.0
    %810 = vmatpush1.msra.mxu0 %v355
    %811 = vmatprep.subr.mxu0 0.0
    %812 = vmatpush1.msra.mxu0 %v356
    %813 = vmatprep.subr.mxu0 0.0
    %814 = vmatpush1.msra.mxu0 %v357
    %815 = vmatprep.subr.mxu0 0.0
    %816 = vmatpush1.msra.mxu0 %v358
    %817 = vmatprep.subr.mxu0 0.0
    %818 = vmatpush1.msra.mxu0 %v359
    %819 = vmatprep.subr.mxu0 0.0
    %820 = vmatpush1.msra.mxu0 %v360
    %821 = vmatprep.subr.mxu0 0.0
    %822 = vmatpush1.msra.mxu0 %v361
    %823 = vmatprep.subr.mxu0 0.0
    %824 = vmatpush1.msra.mxu0 %v362
    %825 = vmatprep.subr.mxu0 0.0
    %826 = vmatpush1.msra.mxu0 %v363
    %827 = vmatprep.subr.mxu0 0.0
    %828 = vmatpush1.msra.mxu0 0.0
    %829 = vmatprep.subr.mxu0 0.0
    %830 = vmatpush1.msra.mxu0 0.0
    %831 = vmatprep.subr.mxu0 0.0
    %832 = vmatpush1.msra.mxu0 0.0
    %833 = vmatprep.subr.mxu0 0.0
    %834 = vmatpush1.msra.mxu0 0.0
    %835 = vmatprep.subr.mxu0 0.0
    %836 = vmatpush1.msra.mxu0 0.0
    %837 = vmatprep.subr.mxu0 0.0
    %838 = vmatpush1.msra.mxu0 0.0
    %839 = vmatprep.subr.mxu0 0.0
    %840 = vmatpush1.msra.mxu0 0.0
    %841 = vmatprep.subr.mxu0 0.0
    %842 = vmatpush1.msra.mxu0 0.0
    %843 = vmatprep.subr.mxu0 0.0
    %844 = vmatpush1.msra.mxu0 0.0
    %845 = vmatprep.subr.mxu0 0.0
    %846 = vmatpush1.msra.mxu0 0.0
    %847 = vmatprep.subr.mxu0 0.0
    %848 = vmatpush1.msra.mxu0 0.0
    %849 = vmatprep.subr.mxu0 0.0
    %850 = vmatpush1.msra.mxu0 0.0
    %851 = vmatprep.subr.mxu0 0.0
    %852 = vmatpush1.msra.mxu0 0.0
    %853 = vmatprep.subr.mxu0 0.0
    %854 = vmatpush1.msra.mxu0 0.0
    %855 = vmatprep.subr.mxu0 0.0
    %856 = vmatpush1.msra.mxu0 0.0
    %857 = vmatprep.subr.mxu0 0.0
    %858 = vmatpush1.msra.mxu0 0.0
    %859 = vmatprep.mubr.f32.mxu0 0.0
    %860 = vmatmul.mubr.f32.gmra.mrb[0].mxu0 %v793
    %v861 = vpop.f32.mrb[0].mxu0
    %v862 = vadd.f32 0.0, %v861
    %v863 = vpop.f32.mrb[0].mxu0
    %864 = vmatprep.mubr.f32.mxu0 0.0
    %865 = vmatmul.mubr.f32.gmra.mrb[0].mxu0 %v794
    %v866 = vpop.f32.mrb[0].mxu0
    %v867 = vadd.f32 0.0, %v866
    %v868 = vpop.f32.mrb[0].mxu0
    %869 = vdwg.mxu0
    %v870 = vadd.f32 %v308, %v862
    %v871 = vadd.f32 %v313, %v867
    %v872 = vtanh.pop %v870
    %v873 = vtanh.pop %v871
    %v874 = vsub.f32 1.0, %v617
    %v875 = vsub.f32 1.0, %v619
    %v876 = vmul.f32 %v874, %v483
    %v877 = vmul.f32 %v875, %v488
    %v878 = vmul.f32 %v617, %v872
    %v879 = vmul.f32 %v619, %v873
    %v880 = vadd.f32 %v876, %v878
    %v881 = vadd.f32 %v877, %v879
    %v882 = vmul.f32 %v880, %v381
    %v883 = vmul.f32 %v881, %v382
    %884 = vmatprep.subr.mxu0 0.0
    %885 = vmatpush1.msra.mxu0 %v882
    %886 = vmatprep.subr.mxu0 0.0
    %887 = vmatpush1.msra.mxu0 %v883
    %888 = vmatprep.subr.mxu0 0.0
    %889 = vmatpush1.msra.mxu0 0.0
    %890 = vmatprep.subr.mxu0 0.0
    %891 = vmatpush1.msra.mxu0 0.0
    %892 = vmatprep.subr.mxu0 0.0
    %893 = vmatpush1.msra.mxu0 0.0
    %894 = vmatprep.subr.mxu0 0.0
    %895 = vmatpush1.msra.mxu0 0.0
    %896 = vmatprep.subr.mxu0 0.0
    %897 = vmatpush1.msra.mxu0 0.0
    %898 = vmatprep.subr.mxu0 0.0
    %899 = vmatpush1.msra.mxu0 0.0
    %900 = vmatprep.subr.mxu0 0.0
    %901 = vmatpush1.msra.mxu0 0.0
    %902 = vmatprep.subr.mxu0 0.0
    %903 = vmatpush1.msra.mxu0 0.0
    %904 = vmatprep.subr.mxu0 0.0
    %905 = vmatpush1.msra.mxu0 0.0
    %906 = vmatprep.subr.mxu0 0.0
    %907 = vmatpush1.msra.mxu0 0.0
    %908 = vmatprep.subr.mxu0 0.0
    %909 = vmatpush1.msra.mxu0 0.0
    %910 = vmatprep.subr.mxu0 0.0
    %911 = vmatpush1.msra.mxu0 0.0
    %912 = vmatprep.subr.mxu0 0.0
    %913 = vmatpush1.msra.mxu0 0.0
    %914 = vmatprep.subr.mxu0 0.0
    %915 = vmatpush1.msra.mxu0 0.0
    %916 = vmatprep.subr.mxu0 0.0
    %917 = vmatpush1.msra.mxu0 0.0
    %918 = vmatprep.subr.mxu0 0.0
    %919 = vmatpush1.msra.mxu0 0.0
    %920 = vmatprep.subr.mxu0 0.0
    %921 = vmatpush1.msra.mxu0 0.0
    %922 = vmatprep.subr.mxu0 0.0
    %923 = vmatpush1.msra.mxu0 0.0
    %924 = vmatprep.subr.mxu0 0.0
    %925 = vmatpush1.msra.mxu0 0.0
    %926 = vmatprep.subr.mxu0 0.0
    %927 = vmatpush1.msra.mxu0 0.0
    %928 = vmatprep.subr.mxu0 0.0
    %929 = vmatpush1.msra.mxu0 0.0
    %930 = vmatprep.subr.mxu0 0.0
    %931 = vmatpush1.msra.mxu0 0.0
    %932 = vmatprep.subr.mxu0 0.0
    %933 = vmatpush1.msra.mxu0 0.0
    %934 = vmatprep.subr.mxu0 0.0
    %935 = vmatpush1.msra.mxu0 0.0
    %936 = vmatprep.subr.mxu0 0.0
    %937 = vmatpush1.msra.mxu0 0.0
    %938 = vmatprep.subr.mxu0 0.0
    %939 = vmatpush1.msra.mxu0 0.0
    %940 = vmatprep.subr.mxu0 0.0
    %941 = vmatpush1.msra.mxu0 0.0
    %942 = vmatprep.subr.mxu0 0.0
    %943 = vmatpush1.msra.mxu0 0.0
    %944 = vmatprep.subr.mxu0 0.0
    %945 = vmatpush1.msra.mxu0 0.0
    %946 = vmatprep.subr.mxu0 0.0
    %947 = vmatpush1.msra.mxu0 0.0
    %948 = vmatprep.mubr.f32.mxu0 0.0
    %949 = vmatmul.mubr.f32.gmra.mrb[0].mxu0 %v387
    %v950 = vpop.f32.mrb[0].mxu0
    %v951 = vadd.f32 0.0, %v950
    %v952 = vpop.f32.mrb[0].mxu0
    %953 = vmatprep.mubr.f32.mxu0 0.0
    %954 = vmatmul.mubr.f32.gmra.mrb[0].mxu0 %v390
    %v955 = vpop.f32.mrb[0].mxu0
    %v956 = vadd.f32 0.0, %v955
    %v957 = vpop.f32.mrb[0].mxu0
    %958 = vmatprep.mubr.f32.mxu0 0.0
    %959 = vmatmul.mubr.f32.gmra.mrb[0].mxu0 %v393
    %v960 = vpop.f32.mrb[0].mxu0
    %v961 = vadd.f32 0.0, %v960
    %v962 = vpop.f32.mrb[0].mxu0
    %963 = vmatprep.mubr.f32.mxu0 0.0
    %964 = vmatmul.mubr.f32.gmra.mrb[0].mxu0 %v396
    %v965 = vpop.f32.mrb[0].mxu0
    %v966 = vadd.f32 0.0, %v965
    %v967 = vpop.f32.mrb[0].mxu0
    %968 = vmatprep.mubr.f32.mxu0 0.0
    %969 = vmatmul.mubr.f32.gmra.mrb[0].mxu0 %v399
    %v970 = vpop.f32.mrb[0].mxu0
    %v971 = vadd.f32 0.0, %v970
    %v972 = vpop.f32.mrb[0].mxu0
    %973 = vmatprep.mubr.f32.mxu0 0.0
    %974 = vmatmul.mubr.f32.gmra.mrb[0].mxu0 %v402
    %v975 = vpop.f32.mrb[0].mxu0
    %v976 = vadd.f32 0.0, %v975
    %v977 = vpop.f32.mrb[0].mxu0
    %978 = vmatprep.mubr.f32.mxu0 0.0
    %979 = vmatmul.mubr.f32.gmra.mrb[0].mxu0 %v405
    %v980 = vpop.f32.mrb[0].mxu0
    %v981 = vadd.f32 0.0, %v980
    %v982 = vpop.f32.mrb[0].mxu0
    %983 = vmatprep.mubr.f32.mxu0 0.0
    %984 = vmatmul.mubr.f32.gmra.mrb[0].mxu0 %v408
    %v985 = vpop.f32.mrb[0].mxu0
    %v986 = vadd.f32 0.0, %v985
    %v987 = vpop.f32.mrb[0].mxu0
    %988 = vmatprep.mubr.f32.mxu0 0.0
    %989 = vmatmul.mubr.f32.gmra.mrb[0].mxu0 %v411
    %v990 = vpop.f32.mrb[0].mxu0
    %v991 = vadd.f32 0.0, %v990
    %v992 = vpop.f32.mrb[0].mxu0
    %993 = vmatprep.mubr.f32.mxu0 0.0
    %994 = vmatmul.mubr.f32.gmra.mrb[0].mxu0 %v414
    %v995 = vpop.f32.mrb[0].mxu0
    %v996 = vadd.f32 0.0, %v995
    %v997 = vpop.f32.mrb[0].mxu0
    %998 = vdwg.mxu0
    %999 = vmatprep.subr.mxu0 0.0
    %1000 = vmatpush1.msra.mxu0 %v316
    %1001 = vmatprep.subr.mxu0 0.0
    %1002 = vmatpush1.msra.mxu0 %v317
    %1003 = vmatprep.subr.mxu0 0.0
    %1004 = vmatpush1.msra.mxu0 %v318
    %1005 = vmatprep.subr.mxu0 0.0
    %1006 = vmatpush1.msra.mxu0 %v319
    %1007 = vmatprep.subr.mxu0 0.0
    %1008 = vmatpush1.msra.mxu0 %v320
    %1009 = vmatprep.subr.mxu0 0.0
    %1010 = vmatpush1.msra.mxu0 %v321
    %1011 = vmatprep.subr.mxu0 0.0
    %1012 = vmatpush1.msra.mxu0 %v322
    %1013 = vmatprep.subr.mxu0 0.0
    %1014 = vmatpush1.msra.mxu0 %v323
    %1015 = vmatprep.subr.mxu0 0.0
    %1016 = vmatpush1.msra.mxu0 %v324
    %1017 = vmatprep.subr.mxu0 0.0
    %1018 = vmatpush1.msra.mxu0 %v325
    %1019 = vmatprep.subr.mxu0 0.0
    %1020 = vmatpush1.msra.mxu0 %v326
    %1021 = vmatprep.subr.mxu0 0.0
    %1022 = vmatpush1.msra.mxu0 %v327
    %1023 = vmatprep.subr.mxu0 0.0
    %1024 = vmatpush1.msra.mxu0 %v328
    %1025 = vmatprep.subr.mxu0 0.0
    %1026 = vmatpush1.msra.mxu0 %v329
    %1027 = vmatprep.subr.mxu0 0.0
    %1028 = vmatpush1.msra.mxu0 %v330
    %1029 = vmatprep.subr.mxu0 0.0
    %1030 = vmatpush1.msra.mxu0 %v331
    %1031 = vmatprep.subr.mxu0 0.0
    %1032 = vmatpush1.msra.mxu0 0.0
    %1033 = vmatprep.subr.mxu0 0.0
    %1034 = vmatpush1.msra.mxu0 0.0
    %1035 = vmatprep.subr.mxu0 0.0
    %1036 = vmatpush1.msra.mxu0 0.0
    %1037 = vmatprep.subr.mxu0 0.0
    %1038 = vmatpush1.msra.mxu0 0.0
    %1039 = vmatprep.subr.mxu0 0.0
    %1040 = vmatpush1.msra.mxu0 0.0
    %1041 = vmatprep.subr.mxu0 0.0
    %1042 = vmatpush1.msra.mxu0 0.0
    %1043 = vmatprep.subr.mxu0 0.0
    %1044 = vmatpush1.msra.mxu0 0.0
    %1045 = vmatprep.subr.mxu0 0.0
    %1046 = vmatpush1.msra.mxu0 0.0
    %1047 = vmatprep.subr.mxu0 0.0
    %1048 = vmatpush1.msra.mxu0 0.0
    %1049 = vmatprep.subr.mxu0 0.0
    %1050 = vmatpush1.msra.mxu0 0.0
    %1051 = vmatprep.subr.mxu0 0.0
    %1052 = vmatpush1.msra.mxu0 0.0
    %1053 = vmatprep.subr.mxu0 0.0
    %1054 = vmatpush1.msra.mxu0 0.0
    %1055 = vmatprep.subr.mxu0 0.0
    %1056 = vmatpush1.msra.mxu0 0.0
    %1057 = vmatprep.subr.mxu0 0.0
    %1058 = vmatpush1.msra.mxu0 0.0
    %1059 = vmatprep.subr.mxu0 0.0
    %1060 = vmatpush1.msra.mxu0 0.0
    %1061 = vmatprep.subr.mxu0 0.0
    %1062 = vmatpush1.msra.mxu0 0.0
    %1063 = vmatprep.mubr.f32.mxu0 0.0
    %1064 = vmatmul.mubr.f32.gmra.mrb[0].mxu0 %v951
    %v1065 = vpop.f32.mrb[0].mxu0
    %v1066 = vadd.f32 0.0, %v1065
    %v1067 = vpop.f32.mrb[0].mxu0
    %1068 = vmatprep.mubr.f32.mxu0 0.0
    %1069 = vmatmul.mubr.f32.gmra.mrb[0].mxu0 %v956
    %v1070 = vpop.f32.mrb[0].mxu0
    %v1071 = vadd.f32 0.0, %v1070
    %v1072 = vpop.f32.mrb[0].mxu0
    %1073 = vdwg.mxu0
    %v1074 = vadd.f32 %v231, %v1066
    %v1075 = vadd.f32 %v237, %v1071
    %v1076 = vxor.u32 %v1074, 2147483648
    %v1077 = vxor.u32 %v1075, 2147483648
    %v1078 = vmul.f32 %v1076, 1.442695
    %v1079 = vpow.pop %v1078
    %v1080 = vmul.f32 %v1077, 1.442695
    %v1081 = vpow.pop %v1080
    %v1082 = vadd.f32 %v1079, 1.0
    %v1083 = vadd.f32 %v1081, 1.0
    %v1084 = vrcp.pop %v1082
    %v1085 = vmul.f32 1.0, %v1084
    %v1086 = vrcp.pop %v1083
    %v1087 = vmul.f32 1.0, %v1086
    %1088 = vmatprep.subr.mxu0 0.0
    %1089 = vmatpush1.msra.mxu0 %v332
    %1090 = vmatprep.subr.mxu0 0.0
    %1091 = vmatpush1.msra.mxu0 %v333
    %1092 = vmatprep.subr.mxu0 0.0
    %1093 = vmatpush1.msra.mxu0 %v334
    %1094 = vmatprep.subr.mxu0 0.0
    %1095 = vmatpush1.msra.mxu0 %v335
    %1096 = vmatprep.subr.mxu0 0.0
    %1097 = vmatpush1.msra.mxu0 %v336
    %1098 = vmatprep.subr.mxu0 0.0
    %1099 = vmatpush1.msra.mxu0 %v337
    %1100 = vmatprep.subr.mxu0 0.0
    %1101 = vmatpush1.msra.mxu0 %v338
    %1102 = vmatprep.subr.mxu0 0.0
    %1103 = vmatpush1.msra.mxu0 %v339
    %1104 = vmatprep.subr.mxu0 0.0
    %1105 = vmatpush1.msra.mxu0 %v340
    %1106 = vmatprep.subr.mxu0 0.0
    %1107 = vmatpush1.msra.mxu0 %v341
    %1108 = vmatprep.subr.mxu0 0.0
    %1109 = vmatpush1.msra.mxu0 %v342
    %1110 = vmatprep.subr.mxu0 0.0
    %1111 = vmatpush1.msra.mxu0 %v343
    %1112 = vmatprep.subr.mxu0 0.0
    %1113 = vmatpush1.msra.mxu0 %v344
    %1114 = vmatprep.subr.mxu0 0.0
    %1115 = vmatpush1.msra.mxu0 %v345
    %1116 = vmatprep.subr.mxu0 0.0
    %1117 = vmatpush1.msra.mxu0 %v346
    %1118 = vmatprep.subr.mxu0 0.0
    %1119 = vmatpush1.msra.mxu0 %v347
    %1120 = vmatprep.subr.mxu0 0.0
    %1121 = vmatpush1.msra.mxu0 0.0
    %1122 = vmatprep.subr.mxu0 0.0
    %1123 = vmatpush1.msra.mxu0 0.0
    %1124 = vmatprep.subr.mxu0 0.0
    %1125 = vmatpush1.msra.mxu0 0.0
    %1126 = vmatprep.subr.mxu0 0.0
    %1127 = vmatpush1.msra.mxu0 0.0
    %1128 = vmatprep.subr.mxu0 0.0
    %1129 = vmatpush1.msra.mxu0 0.0
    %1130 = vmatprep.subr.mxu0 0.0
    %1131 = vmatpush1.msra.mxu0 0.0
    %1132 = vmatprep.subr.mxu0 0.0
    %1133 = vmatpush1.msra.mxu0 0.0
    %1134 = vmatprep.subr.mxu0 0.0
    %1135 = vmatpush1.msra.mxu0 0.0
    %1136 = vmatprep.subr.mxu0 0.0
    %1137 = vmatpush1.msra.mxu0 0.0
    %1138 = vmatprep.subr.mxu0 0.0
    %1139 = vmatpush1.msra.mxu0 0.0
    %1140 = vmatprep.subr.mxu0 0.0
    %1141 = vmatpush1.msra.mxu0 0.0
    %1142 = vmatprep.subr.mxu0 0.0
    %1143 = vmatpush1.msra.mxu0 0.0
    %1144 = vmatprep.subr.mxu0 0.0
    %1145 = vmatpush1.msra.mxu0 0.0
    %1146 = vmatprep.subr.mxu0 0.0
    %1147 = vmatpush1.msra.mxu0 0.0
    %1148 = vmatprep.subr.mxu0 0.0
    %1149 = vmatpush1.msra.mxu0 0.0
    %1150 = vmatprep.subr.mxu0 0.0
    %1151 = vmatpush1.msra.mxu0 0.0
    %1152 = vmatprep.mubr.f32.mxu0 0.0
    %1153 = vmatmul.mubr.f32.gmra.mrb[0].mxu0 %v961
    %v1154 = vpop.f32.mrb[0].mxu0
    %v1155 = vadd.f32 0.0, %v1154
    %v1156 = vpop.f32.mrb[0].mxu0
    %1157 = vmatprep.mubr.f32.mxu0 0.0
    %1158 = vmatmul.mubr.f32.gmra.mrb[0].mxu0 %v966
    %v1159 = vpop.f32.mrb[0].mxu0
    %v1160 = vadd.f32 0.0, %v1159
    %v1161 = vpop.f32.mrb[0].mxu0
    %1162 = vmatprep.mubr.f32.mxu0 0.0
    %1163 = vmatmul.mubr.f32.gmra.mrb[0].mxu0 %v971
    %v1164 = vpop.f32.mrb[0].mxu0
    %v1165 = vadd.f32 0.0, %v1164
    %v1166 = vpop.f32.mrb[0].mxu0
    %1167 = vmatprep.mubr.f32.mxu0 0.0
    %1168 = vmatmul.mubr.f32.gmra.mrb[0].mxu0 %v976
    %v1169 = vpop.f32.mrb[0].mxu0
    %v1170 = vadd.f32 0.0, %v1169
    %v1171 = vpop.f32.mrb[0].mxu0
    %1172 = vmatprep.mubr.f32.mxu0 0.0
    %1173 = vmatmul.mubr.f32.gmra.mrb[0].mxu0 %v981
    %v1174 = vpop.f32.mrb[0].mxu0
    %v1175 = vadd.f32 0.0, %v1174
    %v1176 = vpop.f32.mrb[0].mxu0
    %1177 = vmatprep.mubr.f32.mxu0 0.0
    %1178 = vmatmul.mubr.f32.gmra.mrb[0].mxu0 %v986
    %v1179 = vpop.f32.mrb[0].mxu0
    %v1180 = vadd.f32 0.0, %v1179
    %v1181 = vpop.f32.mrb[0].mxu0
    %1182 = vmatprep.mubr.f32.mxu0 0.0
    %1183 = vmatmul.mubr.f32.gmra.mrb[0].mxu0 %v991
    %v1184 = vpop.f32.mrb[0].mxu0
    %v1185 = vadd.f32 0.0, %v1184
    %v1186 = vpop.f32.mrb[0].mxu0
    %1187 = vmatprep.mubr.f32.mxu0 0.0
    %1188 = vmatmul.mubr.f32.gmra.mrb[0].mxu0 %v996
    %v1189 = vpop.f32.mrb[0].mxu0
    %v1190 = vadd.f32 0.0, %v1189
    %v1191 = vpop.f32.mrb[0].mxu0
    %1192 = vdwg.mxu0
    %v1193 = vadd.f32 %v233, %v1155
    %v1194 = vadd.f32 %v239, %v1160
    %v1195 = vadd.f32 %v233, %v1165
    %v1196 = vadd.f32 %v239, %v1170
    %v1197 = vadd.f32 %v233, %v1175
    %v1198 = vadd.f32 %v239, %v1180
    %v1199 = vadd.f32 %v233, %v1185
    %v1200 = vadd.f32 %v239, %v1190
    %v1201 = vxor.u32 %v1193, 2147483648
    %v1202 = vxor.u32 %v1194, 2147483648
    %v1203 = vxor.u32 %v1195, 2147483648
    %v1204 = vxor.u32 %v1196, 2147483648
    %v1205 = vxor.u32 %v1197, 2147483648
    %v1206 = vxor.u32 %v1198, 2147483648
    %v1207 = vxor.u32 %v1199, 2147483648
    %v1208 = vxor.u32 %v1200, 2147483648
    %v1209 = vmul.f32 %v1201, 1.442695
    %v1210 = vpow.pop %v1209
    %v1211 = vmul.f32 %v1202, 1.442695
    %v1212 = vpow.pop %v1211
    %v1213 = vmul.f32 %v1203, 1.442695
    %v1214 = vpow.pop %v1213
    %v1215 = vmul.f32 %v1204, 1.442695
    %v1216 = vpow.pop %v1215
    %v1217 = vmul.f32 %v1205, 1.442695
    %v1218 = vpow.pop %v1217
    %v1219 = vmul.f32 %v1206, 1.442695
    %v1220 = vpow.pop %v1219
    %v1221 = vmul.f32 %v1207, 1.442695
    %v1222 = vpow.pop %v1221
    %v1223 = vmul.f32 %v1208, 1.442695
    %v1224 = vpow.pop %v1223
    %v1225 = vadd.f32 %v1210, 1.0
    %v1226 = vadd.f32 %v1212, 1.0
    %v1227 = vadd.f32 %v1214, 1.0
    %v1228 = vadd.f32 %v1216, 1.0
    %v1229 = vadd.f32 %v1218, 1.0
    %v1230 = vadd.f32 %v1220, 1.0
    %v1231 = vadd.f32 %v1222, 1.0
    %v1232 = vadd.f32 %v1224, 1.0
    %v1233 = vrcp.pop %v1225
    %v1234 = vmul.f32 1.0, %v1233
    %v1235 = vrcp.pop %v1226
    %v1236 = vmul.f32 1.0, %v1235
    %v1237 = vrcp.pop %v1227
    %v1238 = vmul.f32 1.0, %v1237
    %v1239 = vrcp.pop %v1228
    %v1240 = vmul.f32 1.0, %v1239
    %v1241 = vrcp.pop %v1229
    %v1242 = vmul.f32 1.0, %v1241
    %v1243 = vrcp.pop %v1230
    %v1244 = vmul.f32 1.0, %v1243
    %v1245 = vrcp.pop %v1231
    %v1246 = vmul.f32 1.0, %v1245
    %v1247 = vrcp.pop %v1232
    %v1248 = vmul.f32 1.0, %v1247
    %v1249 = vmul.f32 %v1234, %v961
    %v1250 = vmul.f32 %v1236, %v966
    %v1251 = vmul.f32 %v1238, %v971
    %v1252 = vmul.f32 %v1240, %v976
    %v1253 = vmul.f32 %v1242, %v981
    %v1254 = vmul.f32 %v1244, %v986
    %v1255 = vmul.f32 %v1246, %v991
    %v1256 = vmul.f32 %v1248, %v996
    %v1257 = vadd.f32 %v1249, %v1251
    %v1258 = vadd.f32 %v1250, %v1252
    %v1259 = vadd.f32 %v1257, %v1253
    %v1260 = vadd.f32 %v1258, %v1254
    %v1261 = vadd.f32 %v1259, %v1255
    %v1262 = vadd.f32 %v1260, %v1256
    %1263 = vmatprep.subr.mxu0 0.0
    %1264 = vmatpush1.msra.mxu0 %v348
    %1265 = vmatprep.subr.mxu0 0.0
    %1266 = vmatpush1.msra.mxu0 %v349
    %1267 = vmatprep.subr.mxu0 0.0
    %1268 = vmatpush1.msra.mxu0 %v350
    %1269 = vmatprep.subr.mxu0 0.0
    %1270 = vmatpush1.msra.mxu0 %v351
    %1271 = vmatprep.subr.mxu0 0.0
    %1272 = vmatpush1.msra.mxu0 %v352
    %1273 = vmatprep.subr.mxu0 0.0
    %1274 = vmatpush1.msra.mxu0 %v353
    %1275 = vmatprep.subr.mxu0 0.0
    %1276 = vmatpush1.msra.mxu0 %v354
    %1277 = vmatprep.subr.mxu0 0.0
    %1278 = vmatpush1.msra.mxu0 %v355
    %1279 = vmatprep.subr.mxu0 0.0
    %1280 = vmatpush1.msra.mxu0 %v356
    %1281 = vmatprep.subr.mxu0 0.0
    %1282 = vmatpush1.msra.mxu0 %v357
    %1283 = vmatprep.subr.mxu0 0.0
    %1284 = vmatpush1.msra.mxu0 %v358
    %1285 = vmatprep.subr.mxu0 0.0
    %1286 = vmatpush1.msra.mxu0 %v359
    %1287 = vmatprep.subr.mxu0 0.0
    %1288 = vmatpush1.msra.mxu0 %v360
    %1289 = vmatprep.subr.mxu0 0.0
    %1290 = vmatpush1.msra.mxu0 %v361
    %1291 = vmatprep.subr.mxu0 0.0
    %1292 = vmatpush1.msra.mxu0 %v362
    %1293 = vmatprep.subr.mxu0 0.0
    %1294 = vmatpush1.msra.mxu0 %v363
    %1295 = vmatprep.subr.mxu0 0.0
    %1296 = vmatpush1.msra.mxu0 0.0
    %1297 = vmatprep.subr.mxu0 0.0
    %1298 = vmatpush1.msra.mxu0 0.0
    %1299 = vmatprep.subr.mxu0 0.0
    %1300 = vmatpush1.msra.mxu0 0.0
    %1301 = vmatprep.subr.mxu0 0.0
    %1302 = vmatpush1.msra.mxu0 0.0
    %1303 = vmatprep.subr.mxu0 0.0
    %1304 = vmatpush1.msra.mxu0 0.0
    %1305 = vmatprep.subr.mxu0 0.0
    %1306 = vmatpush1.msra.mxu0 0.0
    %1307 = vmatprep.subr.mxu0 0.0
    %1308 = vmatpush1.msra.mxu0 0.0
    %1309 = vmatprep.subr.mxu0 0.0
    %1310 = vmatpush1.msra.mxu0 0.0
    %1311 = vmatprep.subr.mxu0 0.0
    %1312 = vmatpush1.msra.mxu0 0.0
    %1313 = vmatprep.subr.mxu0 0.0
    %1314 = vmatpush1.msra.mxu0 0.0
    %1315 = vmatprep.subr.mxu0 0.0
    %1316 = vmatpush1.msra.mxu0 0.0
    %1317 = vmatprep.subr.mxu0 0.0
    %1318 = vmatpush1.msra.mxu0 0.0
    %1319 = vmatprep.subr.mxu0 0.0
    %1320 = vmatpush1.msra.mxu0 0.0
    %1321 = vmatprep.subr.mxu0 0.0
    %1322 = vmatpush1.msra.mxu0 0.0
    %1323 = vmatprep.subr.mxu0 0.0
    %1324 = vmatpush1.msra.mxu0 0.0
    %1325 = vmatprep.subr.mxu0 0.0
    %1326 = vmatpush1.msra.mxu0 0.0
    %1327 = vmatprep.mubr.f32.mxu0 0.0
    %1328 = vmatmul.mubr.f32.gmra.mrb[0].mxu0 %v1261
    %v1329 = vpop.f32.mrb[0].mxu0
    %v1330 = vadd.f32 0.0, %v1329
    %v1331 = vpop.f32.mrb[0].mxu0
    %1332 = vmatprep.mubr.f32.mxu0 0.0
    %1333 = vmatmul.mubr.f32.gmra.mrb[0].mxu0 %v1262
    %v1334 = vpop.f32.mrb[0].mxu0
    %v1335 = vadd.f32 0.0, %v1334
    %v1336 = vpop.f32.mrb[0].mxu0
    %1337 = vdwg.mxu0
    %v1338 = vadd.f32 %v308, %v1330
    %v1339 = vadd.f32 %v313, %v1335
    %v1340 = vtanh.pop %v1338
    %v1341 = vtanh.pop %v1339
    %v1342 = vsub.f32 1.0, %v1085
    %v1343 = vsub.f32 1.0, %v1087
    %v1344 = vmul.f32 %v1342, %v951
    %v1345 = vmul.f32 %v1343, %v956
    %v1346 = vmul.f32 %v1085, %v1340
    %v1347 = vmul.f32 %v1087, %v1341
    %v1348 = vadd.f32 %v1344, %v1346
    %v1349 = vadd.f32 %v1345, %v1347
    %v1350 = vmul.f32 %v1348, %v381
    %v1351 = vmul.f32 %v1349, %v382
    %1352 = vmatprep.subr.mxu0 0.0
    %1353 = vmatpush1.msra.mxu0 %v1350
    %1354 = vmatprep.subr.mxu0 0.0
    %1355 = vmatpush1.msra.mxu0 %v1351
    %1356 = vmatprep.subr.mxu0 0.0
    %1357 = vmatpush1.msra.mxu0 0.0
    %1358 = vmatprep.subr.mxu0 0.0
    %1359 = vmatpush1.msra.mxu0 0.0
    %1360 = vmatprep.subr.mxu0 0.0
    %1361 = vmatpush1.msra.mxu0 0.0
    %1362 = vmatprep.subr.mxu0 0.0
    %1363 = vmatpush1.msra.mxu0 0.0
    %1364 = vmatprep.subr.mxu0 0.0
    %1365 = vmatpush1.msra.mxu0 0.0
    %1366 = vmatprep.subr.mxu0 0.0
    %1367 = vmatpush1.msra.mxu0 0.0
    %1368 = vmatprep.subr.mxu0 0.0
    %1369 = vmatpush1.msra.mxu0 0.0
    %1370 = vmatprep.subr.mxu0 0.0
    %1371 = vmatpush1.msra.mxu0 0.0
    %1372 = vmatprep.subr.mxu0 0.0
    %1373 = vmatpush1.msra.mxu0 0.0
    %1374 = vmatprep.subr.mxu0 0.0
    %1375 = vmatpush1.msra.mxu0 0.0
    %1376 = vmatprep.subr.mxu0 0.0
    %1377 = vmatpush1.msra.mxu0 0.0
    %1378 = vmatprep.subr.mxu0 0.0
    %1379 = vmatpush1.msra.mxu0 0.0
    %1380 = vmatprep.subr.mxu0 0.0
    %1381 = vmatpush1.msra.mxu0 0.0
    %1382 = vmatprep.subr.mxu0 0.0
    %1383 = vmatpush1.msra.mxu0 0.0
    %1384 = vmatprep.subr.mxu0 0.0
    %1385 = vmatpush1.msra.mxu0 0.0
    %1386 = vmatprep.subr.mxu0 0.0
    %1387 = vmatpush1.msra.mxu0 0.0
    %1388 = vmatprep.subr.mxu0 0.0
    %1389 = vmatpush1.msra.mxu0 0.0
    %1390 = vmatprep.subr.mxu0 0.0
    %1391 = vmatpush1.msra.mxu0 0.0
    %1392 = vmatprep.subr.mxu0 0.0
    %1393 = vmatpush1.msra.mxu0 0.0
    %1394 = vmatprep.subr.mxu0 0.0
    %1395 = vmatpush1.msra.mxu0 0.0
    %1396 = vmatprep.subr.mxu0 0.0
    %1397 = vmatpush1.msra.mxu0 0.0
    %1398 = vmatprep.subr.mxu0 0.0
    %1399 = vmatpush1.msra.mxu0 0.0
    %1400 = vmatprep.subr.mxu0 0.0
    %1401 = vmatpush1.msra.mxu0 0.0
    %1402 = vmatprep.subr.mxu0 0.0
    %1403 = vmatpush1.msra.mxu0 0.0
    %1404 = vmatprep.subr.mxu0 0.0
    %1405 = vmatpush1.msra.mxu0 0.0
    %1406 = vmatprep.subr.mxu0 0.0
    %1407 = vmatpush1.msra.mxu0 0.0
    %1408 = vmatprep.subr.mxu0 0.0
    %1409 = vmatpush1.msra.mxu0 0.0
    %1410 = vmatprep.subr.mxu0 0.0
    %1411 = vmatpush1.msra.mxu0 0.0
    %1412 = vmatprep.subr.mxu0 0.0
    %1413 = vmatpush1.msra.mxu0 0.0
    %1414 = vmatprep.subr.mxu0 0.0
    %1415 = vmatpush1.msra.mxu0 0.0
    %1416 = vmatprep.mubr.f32.mxu0 0.0
    %1417 = vmatmul.mubr.f32.gmra.mrb[0].mxu0 %v387
    %v1418 = vpop.f32.mrb[0].mxu0
    %v1419 = vadd.f32 0.0, %v1418
    %v1420 = vpop.f32.mrb[0].mxu0
    %1421 = vmatprep.mubr.f32.mxu0 0.0
    %1422 = vmatmul.mubr.f32.gmra.mrb[0].mxu0 %v390
    %v1423 = vpop.f32.mrb[0].mxu0
    %v1424 = vadd.f32 0.0, %v1423
    %v1425 = vpop.f32.mrb[0].mxu0
    %1426 = vmatprep.mubr.f32.mxu0 0.0
    %1427 = vmatmul.mubr.f32.gmra.mrb[0].mxu0 %v393
    %v1428 = vpop.f32.mrb[0].mxu0
    %v1429 = vadd.f32 0.0, %v1428
    %v1430 = vpop.f32.mrb[0].mxu0
    %1431 = vmatprep.mubr.f32.mxu0 0.0
    %1432 = vmatmul.mubr.f32.gmra.mrb[0].mxu0 %v396
    %v1433 = vpop.f32.mrb[0].mxu0
    %v1434 = vadd.f32 0.0, %v1433
    %v1435 = vpop.f32.mrb[0].mxu0
    %1436 = vmatprep.mubr.f32.mxu0 0.0
    %1437 = vmatmul.mubr.f32.gmra.mrb[0].mxu0 %v399
    %v1438 = vpop.f32.mrb[0].mxu0
    %v1439 = vadd.f32 0.0, %v1438
    %v1440 = vpop.f32.mrb[0].mxu0
    %1441 = vmatprep.mubr.f32.mxu0 0.0
    %1442 = vmatmul.mubr.f32.gmra.mrb[0].mxu0 %v402
    %v1443 = vpop.f32.mrb[0].mxu0
    %v1444 = vadd.f32 0.0, %v1443
    %v1445 = vpop.f32.mrb[0].mxu0
    %1446 = vmatprep.mubr.f32.mxu0 0.0
    %1447 = vmatmul.mubr.f32.gmra.mrb[0].mxu0 %v405
    %v1448 = vpop.f32.mrb[0].mxu0
    %v1449 = vadd.f32 0.0, %v1448
    %v1450 = vpop.f32.mrb[0].mxu0
    %1451 = vmatprep.mubr.f32.mxu0 0.0
    %1452 = vmatmul.mubr.f32.gmra.mrb[0].mxu0 %v408
    %v1453 = vpop.f32.mrb[0].mxu0
    %v1454 = vadd.f32 0.0, %v1453
    %v1455 = vpop.f32.mrb[0].mxu0
    %1456 = vmatprep.mubr.f32.mxu0 0.0
    %1457 = vmatmul.mubr.f32.gmra.mrb[0].mxu0 %v411
    %v1458 = vpop.f32.mrb[0].mxu0
    %v1459 = vadd.f32 0.0, %v1458
    %v1460 = vpop.f32.mrb[0].mxu0
    %1461 = vmatprep.mubr.f32.mxu0 0.0
    %1462 = vmatmul.mubr.f32.gmra.mrb[0].mxu0 %v414
    %v1463 = vpop.f32.mrb[0].mxu0
    %v1464 = vadd.f32 0.0, %v1463
    %v1465 = vpop.f32.mrb[0].mxu0
    %1466 = vdwg.mxu0
    %1467 = vmatprep.subr.mxu0 0.0
    %1468 = vmatpush1.msra.mxu0 %v316
    %1469 = vmatprep.subr.mxu0 0.0
    %1470 = vmatpush1.msra.mxu0 %v317
    %1471 = vmatprep.subr.mxu0 0.0
    %1472 = vmatpush1.msra.mxu0 %v318
    %1473 = vmatprep.subr.mxu0 0.0
    %1474 = vmatpush1.msra.mxu0 %v319
    %1475 = vmatprep.subr.mxu0 0.0
    %1476 = vmatpush1.msra.mxu0 %v320
    %1477 = vmatprep.subr.mxu0 0.0
    %1478 = vmatpush1.msra.mxu0 %v321
    %1479 = vmatprep.subr.mxu0 0.0
    %1480 = vmatpush1.msra.mxu0 %v322
    %1481 = vmatprep.subr.mxu0 0.0
    %1482 = vmatpush1.msra.mxu0 %v323
    %1483 = vmatprep.subr.mxu0 0.0
    %1484 = vmatpush1.msra.mxu0 %v324
    %1485 = vmatprep.subr.mxu0 0.0
    %1486 = vmatpush1.msra.mxu0 %v325
    %1487 = vmatprep.subr.mxu0 0.0
    %1488 = vmatpush1.msra.mxu0 %v326
    %1489 = vmatprep.subr.mxu0 0.0
    %1490 = vmatpush1.msra.mxu0 %v327
    %1491 = vmatprep.subr.mxu0 0.0
    %1492 = vmatpush1.msra.mxu0 %v328
    %1493 = vmatprep.subr.mxu0 0.0
    %1494 = vmatpush1.msra.mxu0 %v329
    %1495 = vmatprep.subr.mxu0 0.0
    %1496 = vmatpush1.msra.mxu0 %v330
    %1497 = vmatprep.subr.mxu0 0.0
    %1498 = vmatpush1.msra.mxu0 %v331
    %1499 = vmatprep.subr.mxu0 0.0
    %1500 = vmatpush1.msra.mxu0 0.0
    %1501 = vmatprep.subr.mxu0 0.0
    %1502 = vmatpush1.msra.mxu0 0.0
    %1503 = vmatprep.subr.mxu0 0.0
    %1504 = vmatpush1.msra.mxu0 0.0
    %1505 = vmatprep.subr.mxu0 0.0
    %1506 = vmatpush1.msra.mxu0 0.0
    %1507 = vmatprep.subr.mxu0 0.0
    %1508 = vmatpush1.msra.mxu0 0.0
    %1509 = vmatprep.subr.mxu0 0.0
    %1510 = vmatpush1.msra.mxu0 0.0
    %1511 = vmatprep.subr.mxu0 0.0
    %1512 = vmatpush1.msra.mxu0 0.0
    %1513 = vmatprep.subr.mxu0 0.0
    %1514 = vmatpush1.msra.mxu0 0.0
    %1515 = vmatprep.subr.mxu0 0.0
    %1516 = vmatpush1.msra.mxu0 0.0
    %1517 = vmatprep.subr.mxu0 0.0
    %1518 = vmatpush1.msra.mxu0 0.0
    %1519 = vmatprep.subr.mxu0 0.0
    %1520 = vmatpush1.msra.mxu0 0.0
    %1521 = vmatprep.subr.mxu0 0.0
    %1522 = vmatpush1.msra.mxu0 0.0
    %1523 = vmatprep.subr.mxu0 0.0
    %1524 = vmatpush1.msra.mxu0 0.0
    %1525 = vmatprep.subr.mxu0 0.0
    %1526 = vmatpush1.msra.mxu0 0.0
    %1527 = vmatprep.subr.mxu0 0.0
    %1528 = vmatpush1.msra.mxu0 0.0
    %1529 = vmatprep.subr.mxu0 0.0
    %1530 = vmatpush1.msra.mxu0 0.0
    %1531 = vmatprep.mubr.f32.mxu0 0.0
    %1532 = vmatmul.mubr.f32.gmra.mrb[0].mxu0 %v1419
    %v1533 = vpop.f32.mrb[0].mxu0
    %v1534 = vadd.f32 0.0, %v1533
    %v1535 = vpop.f32.mrb[0].mxu0
    %1536 = vmatprep.mubr.f32.mxu0 0.0
    %1537 = vmatmul.mubr.f32.gmra.mrb[0].mxu0 %v1424
    %v1538 = vpop.f32.mrb[0].mxu0
    %v1539 = vadd.f32 0.0, %v1538
    %v1540 = vpop.f32.mrb[0].mxu0
    %1541 = vdwg.mxu0
    %v1542 = vadd.f32 %v231, %v1534
    %v1543 = vadd.f32 %v237, %v1539
    %v1544 = vxor.u32 %v1542, 2147483648
    %v1545 = vxor.u32 %v1543, 2147483648
    %v1546 = vmul.f32 %v1544, 1.442695
    %v1547 = vpow.pop %v1546
    %v1548 = vmul.f32 %v1545, 1.442695
    %v1549 = vpow.pop %v1548
    %v1550 = vadd.f32 %v1547, 1.0
    %v1551 = vadd.f32 %v1549, 1.0
    %v1552 = vrcp.pop %v1550
    %v1553 = vmul.f32 1.0, %v1552
    %v1554 = vrcp.pop %v1551
    %v1555 = vmul.f32 1.0, %v1554
    %1556 = vmatprep.subr.mxu0 0.0
    %1557 = vmatpush1.msra.mxu0 %v332
    %1558 = vmatprep.subr.mxu0 0.0
    %1559 = vmatpush1.msra.mxu0 %v333
    %1560 = vmatprep.subr.mxu0 0.0
    %1561 = vmatpush1.msra.mxu0 %v334
    %1562 = vmatprep.subr.mxu0 0.0
    %1563 = vmatpush1.msra.mxu0 %v335
    %1564 = vmatprep.subr.mxu0 0.0
    %1565 = vmatpush1.msra.mxu0 %v336
    %1566 = vmatprep.subr.mxu0 0.0
    %1567 = vmatpush1.msra.mxu0 %v337
    %1568 = vmatprep.subr.mxu0 0.0
    %1569 = vmatpush1.msra.mxu0 %v338
    %1570 = vmatprep.subr.mxu0 0.0
    %1571 = vmatpush1.msra.mxu0 %v339
    %1572 = vmatprep.subr.mxu0 0.0
    %1573 = vmatpush1.msra.mxu0 %v340
    %1574 = vmatprep.subr.mxu0 0.0
    %1575 = vmatpush1.msra.mxu0 %v341
    %1576 = vmatprep.subr.mxu0 0.0
    %1577 = vmatpush1.msra.mxu0 %v342
    %1578 = vmatprep.subr.mxu0 0.0
    %1579 = vmatpush1.msra.mxu0 %v343
    %1580 = vmatprep.subr.mxu0 0.0
    %1581 = vmatpush1.msra.mxu0 %v344
    %1582 = vmatprep.subr.mxu0 0.0
    %1583 = vmatpush1.msra.mxu0 %v345
    %1584 = vmatprep.subr.mxu0 0.0
    %1585 = vmatpush1.msra.mxu0 %v346
    %1586 = vmatprep.subr.mxu0 0.0
    %1587 = vmatpush1.msra.mxu0 %v347
    %1588 = vmatprep.subr.mxu0 0.0
    %1589 = vmatpush1.msra.mxu0 0.0
    %1590 = vmatprep.subr.mxu0 0.0
    %1591 = vmatpush1.msra.mxu0 0.0
    %1592 = vmatprep.subr.mxu0 0.0
    %1593 = vmatpush1.msra.mxu0 0.0
    %1594 = vmatprep.subr.mxu0 0.0
    %1595 = vmatpush1.msra.mxu0 0.0
    %1596 = vmatprep.subr.mxu0 0.0
    %1597 = vmatpush1.msra.mxu0 0.0
    %1598 = vmatprep.subr.mxu0 0.0
    %1599 = vmatpush1.msra.mxu0 0.0
    %1600 = vmatprep.subr.mxu0 0.0
    %1601 = vmatpush1.msra.mxu0 0.0
    %1602 = vmatprep.subr.mxu0 0.0
    %1603 = vmatpush1.msra.mxu0 0.0
    %1604 = vmatprep.subr.mxu0 0.0
    %1605 = vmatpush1.msra.mxu0 0.0
    %1606 = vmatprep.subr.mxu0 0.0
    %1607 = vmatpush1.msra.mxu0 0.0
    %1608 = vmatprep.subr.mxu0 0.0
    %1609 = vmatpush1.msra.mxu0 0.0
    %1610 = vmatprep.subr.mxu0 0.0
    %1611 = vmatpush1.msra.mxu0 0.0
    %1612 = vmatprep.subr.mxu0 0.0
    %1613 = vmatpush1.msra.mxu0 0.0
    %1614 = vmatprep.subr.mxu0 0.0
    %1615 = vmatpush1.msra.mxu0 0.0
    %1616 = vmatprep.subr.mxu0 0.0
    %1617 = vmatpush1.msra.mxu0 0.0
    %1618 = vmatprep.subr.mxu0 0.0
    %1619 = vmatpush1.msra.mxu0 0.0
    %1620 = vmatprep.mubr.f32.mxu0 0.0
    %1621 = vmatmul.mubr.f32.gmra.mrb[0].mxu0 %v1429
    %v1622 = vpop.f32.mrb[0].mxu0
    %v1623 = vadd.f32 0.0, %v1622
    %v1624 = vpop.f32.mrb[0].mxu0
    %1625 = vmatprep.mubr.f32.mxu0 0.0
    %1626 = vmatmul.mubr.f32.gmra.mrb[0].mxu0 %v1434
    %v1627 = vpop.f32.mrb[0].mxu0
    %v1628 = vadd.f32 0.0, %v1627
    %v1629 = vpop.f32.mrb[0].mxu0
    %1630 = vmatprep.mubr.f32.mxu0 0.0
    %1631 = vmatmul.mubr.f32.gmra.mrb[0].mxu0 %v1439
    %v1632 = vpop.f32.mrb[0].mxu0
    %v1633 = vadd.f32 0.0, %v1632
    %v1634 = vpop.f32.mrb[0].mxu0
    %1635 = vmatprep.mubr.f32.mxu0 0.0
    %1636 = vmatmul.mubr.f32.gmra.mrb[0].mxu0 %v1444
    %v1637 = vpop.f32.mrb[0].mxu0
    %v1638 = vadd.f32 0.0, %v1637
    %v1639 = vpop.f32.mrb[0].mxu0
    %1640 = vmatprep.mubr.f32.mxu0 0.0
    %1641 = vmatmul.mubr.f32.gmra.mrb[0].mxu0 %v1449
    %v1642 = vpop.f32.mrb[0].mxu0
    %v1643 = vadd.f32 0.0, %v1642
    %v1644 = vpop.f32.mrb[0].mxu0
    %1645 = vmatprep.mubr.f32.mxu0 0.0
    %1646 = vmatmul.mubr.f32.gmra.mrb[0].mxu0 %v1454
    %v1647 = vpop.f32.mrb[0].mxu0
    %v1648 = vadd.f32 0.0, %v1647
    %v1649 = vpop.f32.mrb[0].mxu0
    %1650 = vmatprep.mubr.f32.mxu0 0.0
    %1651 = vmatmul.mubr.f32.gmra.mrb[0].mxu0 %v1459
    %v1652 = vpop.f32.mrb[0].mxu0
    %v1653 = vadd.f32 0.0, %v1652
    %v1654 = vpop.f32.mrb[0].mxu0
    %1655 = vmatprep.mubr.f32.mxu0 0.0
    %1656 = vmatmul.mubr.f32.gmra.mrb[0].mxu0 %v1464
    %v1657 = vpop.f32.mrb[0].mxu0
    %v1658 = vadd.f32 0.0, %v1657
    %v1659 = vpop.f32.mrb[0].mxu0
    %1660 = vdwg.mxu0
    %v1661 = vadd.f32 %v233, %v1623
    %v1662 = vadd.f32 %v239, %v1628
    %v1663 = vadd.f32 %v233, %v1633
    %v1664 = vadd.f32 %v239, %v1638
    %v1665 = vadd.f32 %v233, %v1643
    %v1666 = vadd.f32 %v239, %v1648
    %v1667 = vadd.f32 %v233, %v1653
    %v1668 = vadd.f32 %v239, %v1658
    %v1669 = vxor.u32 %v1661, 2147483648
    %v1670 = vxor.u32 %v1662, 2147483648
    %v1671 = vxor.u32 %v1663, 2147483648
    %v1672 = vxor.u32 %v1664, 2147483648
    %v1673 = vxor.u32 %v1665, 2147483648
    %v1674 = vxor.u32 %v1666, 2147483648
    %v1675 = vxor.u32 %v1667, 2147483648
    %v1676 = vxor.u32 %v1668, 2147483648
    %v1677 = vmul.f32 %v1669, 1.442695
    %v1678 = vpow.pop %v1677
    %v1679 = vmul.f32 %v1670, 1.442695
    %v1680 = vpow.pop %v1679
    %v1681 = vmul.f32 %v1671, 1.442695
    %v1682 = vpow.pop %v1681
    %v1683 = vmul.f32 %v1672, 1.442695
    %v1684 = vpow.pop %v1683
    %v1685 = vmul.f32 %v1673, 1.442695
    %v1686 = vpow.pop %v1685
    %v1687 = vmul.f32 %v1674, 1.442695
    %v1688 = vpow.pop %v1687
    %v1689 = vmul.f32 %v1675, 1.442695
    %v1690 = vpow.pop %v1689
    %v1691 = vmul.f32 %v1676, 1.442695
    %v1692 = vpow.pop %v1691
    %v1693 = vadd.f32 %v1678, 1.0
    %v1694 = vadd.f32 %v1680, 1.0
    %v1695 = vadd.f32 %v1682, 1.0
    %v1696 = vadd.f32 %v1684, 1.0
    %v1697 = vadd.f32 %v1686, 1.0
    %v1698 = vadd.f32 %v1688, 1.0
    %v1699 = vadd.f32 %v1690, 1.0
    %v1700 = vadd.f32 %v1692, 1.0
    %v1701 = vrcp.pop %v1693
    %v1702 = vmul.f32 1.0, %v1701
    %v1703 = vrcp.pop %v1694
    %v1704 = vmul.f32 1.0, %v1703
    %v1705 = vrcp.pop %v1695
    %v1706 = vmul.f32 1.0, %v1705
    %v1707 = vrcp.pop %v1696
    %v1708 = vmul.f32 1.0, %v1707
    %v1709 = vrcp.pop %v1697
    %v1710 = vmul.f32 1.0, %v1709
    %v1711 = vrcp.pop %v1698
    %v1712 = vmul.f32 1.0, %v1711
    %v1713 = vrcp.pop %v1699
    %v1714 = vmul.f32 1.0, %v1713
    %v1715 = vrcp.pop %v1700
    %v1716 = vmul.f32 1.0, %v1715
    %v1717 = vmul.f32 %v1702, %v1429
    %v1718 = vmul.f32 %v1704, %v1434
    %v1719 = vmul.f32 %v1706, %v1439
    %v1720 = vmul.f32 %v1708, %v1444
    %v1721 = vmul.f32 %v1710, %v1449
    %v1722 = vmul.f32 %v1712, %v1454
    %v1723 = vmul.f32 %v1714, %v1459
    %v1724 = vmul.f32 %v1716, %v1464
    %v1725 = vadd.f32 %v1717, %v1719
    %v1726 = vadd.f32 %v1718, %v1720
    %v1727 = vadd.f32 %v1725, %v1721
    %v1728 = vadd.f32 %v1726, %v1722
    %v1729 = vadd.f32 %v1727, %v1723
    %v1730 = vadd.f32 %v1728, %v1724
    %1731 = vmatprep.subr.mxu0 0.0
    %1732 = vmatpush1.msra.mxu0 %v348
    %1733 = vmatprep.subr.mxu0 0.0
    %1734 = vmatpush1.msra.mxu0 %v349
    %1735 = vmatprep.subr.mxu0 0.0
    %1736 = vmatpush1.msra.mxu0 %v350
    %1737 = vmatprep.subr.mxu0 0.0
    %1738 = vmatpush1.msra.mxu0 %v351
    %1739 = vmatprep.subr.mxu0 0.0
    %1740 = vmatpush1.msra.mxu0 %v352
    %1741 = vmatprep.subr.mxu0 0.0
    %1742 = vmatpush1.msra.mxu0 %v353
    %1743 = vmatprep.subr.mxu0 0.0
    %1744 = vmatpush1.msra.mxu0 %v354
    %1745 = vmatprep.subr.mxu0 0.0
    %1746 = vmatpush1.msra.mxu0 %v355
    %1747 = vmatprep.subr.mxu0 0.0
    %1748 = vmatpush1.msra.mxu0 %v356
    %1749 = vmatprep.subr.mxu0 0.0
    %1750 = vmatpush1.msra.mxu0 %v357
    %1751 = vmatprep.subr.mxu0 0.0
    %1752 = vmatpush1.msra.mxu0 %v358
    %1753 = vmatprep.subr.mxu0 0.0
    %1754 = vmatpush1.msra.mxu0 %v359
    %1755 = vmatprep.subr.mxu0 0.0
    %1756 = vmatpush1.msra.mxu0 %v360
    %1757 = vmatprep.subr.mxu0 0.0
    %1758 = vmatpush1.msra.mxu0 %v361
    %1759 = vmatprep.subr.mxu0 0.0
    %1760 = vmatpush1.msra.mxu0 %v362
    %1761 = vmatprep.subr.mxu0 0.0
    %1762 = vmatpush1.msra.mxu0 %v363
    %1763 = vmatprep.subr.mxu0 0.0
    %1764 = vmatpush1.msra.mxu0 0.0
    %1765 = vmatprep.subr.mxu0 0.0
    %1766 = vmatpush1.msra.mxu0 0.0
    %1767 = vmatprep.subr.mxu0 0.0
    %1768 = vmatpush1.msra.mxu0 0.0
    %1769 = vmatprep.subr.mxu0 0.0
    %1770 = vmatpush1.msra.mxu0 0.0
    %1771 = vmatprep.subr.mxu0 0.0
    %1772 = vmatpush1.msra.mxu0 0.0
    %1773 = vmatprep.subr.mxu0 0.0
    %1774 = vmatpush1.msra.mxu0 0.0
    %1775 = vmatprep.subr.mxu0 0.0
    %1776 = vmatpush1.msra.mxu0 0.0
    %1777 = vmatprep.subr.mxu0 0.0
    %1778 = vmatpush1.msra.mxu0 0.0
    %1779 = vmatprep.subr.mxu0 0.0
    %1780 = vmatpush1.msra.mxu0 0.0
    %1781 = vmatprep.subr.mxu0 0.0
    %1782 = vmatpush1.msra.mxu0 0.0
    %1783 = vmatprep.subr.mxu0 0.0
    %1784 = vmatpush1.msra.mxu0 0.0
    %1785 = vmatprep.subr.mxu0 0.0
    %1786 = vmatpush1.msra.mxu0 0.0
    %1787 = vmatprep.subr.mxu0 0.0
    %1788 = vmatpush1.msra.mxu0 0.0
    %1789 = vmatprep.subr.mxu0 0.0
    %1790 = vmatpush1.msra.mxu0 0.0
    %1791 = vmatprep.subr.mxu0 0.0
    %1792 = vmatpush1.msra.mxu0 0.0
    %1793 = vmatprep.subr.mxu0 0.0
    %1794 = vmatpush1.msra.mxu0 0.0
    %1795 = vmatprep.mubr.f32.mxu0 0.0
    %1796 = vmatmul.mubr.f32.gmra.mrb[0].mxu0 %v1729
    %v1797 = vpop.f32.mrb[0].mxu0
    %v1798 = vadd.f32 0.0, %v1797
    %v1799 = vpop.f32.mrb[0].mxu0
    %1800 = vmatprep.mubr.f32.mxu0 0.0
    %1801 = vmatmul.mubr.f32.gmra.mrb[0].mxu0 %v1730
    %v1802 = vpop.f32.mrb[0].mxu0
    %v1803 = vadd.f32 0.0, %v1802
    %v1804 = vpop.f32.mrb[0].mxu0
    %1805 = vdwg.mxu0
    %v1806 = vadd.f32 %v308, %v1798
    %v1807 = vadd.f32 %v313, %v1803
    %v1808 = vtanh.pop %v1806
    %v1809 = vtanh.pop %v1807
    %v1810 = vsub.f32 1.0, %v1553
    %v1811 = vsub.f32 1.0, %v1555
    %v1812 = vmul.f32 %v1810, %v1419
    %v1813 = vmul.f32 %v1811, %v1424
    %v1814 = vmul.f32 %v1553, %v1808
    %v1815 = vmul.f32 %v1555, %v1809
    %v1816 = vadd.f32 %v1812, %v1814
    %v1817 = vadd.f32 %v1813, %v1815
    %v1818 = vmul.f32 %v1816, %v381
    %v1819 = vmul.f32 %v1817, %v382
    %1820 = vst [vmem:[#allocation16] sm:$0xff] %v1818
    %1821 = vst [vmem:[#allocation16 + $0x8] sm:$0xff] %v1819
    // Predicated region
    $region66: #{graph_gru_forward.1} parent=1 // pred_check
      _
    $region67: #{graph_gru_forward.1} parent=1 // pred_check_branch
      %1823 = sbr.rel (0) target = $region69
    $region68: #{graph_gru_forward.1} parent=1 // pred_region
      %s1825 = ssub.s32 256, 256
      %1826 = vsyncadd [#allocation4], %s1825
      %s1827 = sshll.u32 [#allocation16], 4
      %s1828 = int_to_ptr.vmem [resolvable:$true] %s1827
      %1833 = dma.vmem_to_hbm [thread:$0]  %s1828, 256, %s8, [#allocation4], 128, 128, 8
    $region69: #{graph_gru_forward.1} parent=1 // pred_fallthru
      _
    // Predicated region
    $region70: #{graph_gru_forward.1} parent=1 // pred_check
      _
    $region71: #{graph_gru_forward.1} parent=1 // pred_check_branch
      %1835 = sbr.rel (0) target = $region73
    $region72: #{graph_gru_forward.1} parent=1 // pred_region
      %1836 = dma.done [#allocation4], 256
    $region73: #{graph_gru_forward.1} parent=1 // pred_fallthru
      _
    %1837 = vsyncpa [#allocation3], 1
    %1838 = vsyncpa [#allocation6], 1
    %1839 = vsyncpa [#allocation9], 1
    %1840 = vsyncpa [#allocation12], 1
    %1841 = vsyncpa [#allocation15], 1
    %1842 = vsyncpa [#allocation4], 1

</llo_original>
